<compile_context>
chip_gen: v7x
topology: tpu7x:2x2x1
jax: 0.10.0
libtpu: 0.0.40
codegen_flags: <defaults>
</compile_context>

<pallas_src>
import jax
import jax.numpy as jnp
from jax.experimental import pallas as pl
from jax.experimental.pallas import tpu as pltpu


def make_attention_kernel(heads, dim_head, compute_dtype, eps=1e-5):
    scale = dim_head ** (-0.5)
    approx_recip = jnp.dtype(compute_dtype) != jnp.dtype(jnp.float32)

    def kernel(x_ref, gamma_ref, wq_ref, wk_ref, wv_ref, wo_ref,
               nk_ref, nv_ref, o_ref):
        bt, seq, dim = x_ref.shape
        m_rows = bt * seq
        groups = heads * bt        # one attention group per (head, batch element)

        # ---------------- LayerNorm (beta = 0), f32 ----------------
        x = x_ref[...].reshape(m_rows, dim)
        gamma = gamma_ref[...]                                   # (1, D)
        mean = jnp.mean(x, axis=-1, keepdims=True)
        var = jnp.mean((x - mean) ** 2, axis=-1, keepdims=True)
        xn = (x - mean) * jax.lax.rsqrt(var + eps) * gamma       # (M, D) f32
        xc = xn.astype(compute_dtype)

        # ---------------- head-batched q/k/v projections ----------------
        # (H, M, D) x (H, D, Dh) -> (H, M, Dh): canonical batched matmuls that
        # produce head-major activations directly (f32 accumulation on MXU).
        xg = jnp.broadcast_to(xc[None], (heads, m_rows, dim))
        q_h = jnp.einsum('hmd,hdk->hmk', xg, wq_ref[...],
                         preferred_element_type=jnp.float32) * scale
        k_h = jnp.einsum('hmd,hdk->hmk', xg, wk_ref[...],
                         preferred_element_type=jnp.float32)
        v_h = jnp.einsum('hmd,hdk->hmk', xg, wv_ref[...],
                         preferred_element_type=jnp.float32)

        # regroup (H, bt*N, Dh) -> (H*bt, N, Dh): pure reshape (no transpose).
        q3f = q_h.reshape(groups, seq, dim_head)                 # f32 (for null logits)
        q3 = q3f.astype(compute_dtype)
        k3 = k_h.reshape(groups, seq, dim_head).astype(compute_dtype)
        v3 = v_h.reshape(groups, seq, dim_head).astype(compute_dtype)

        # null k/v per group (group index g = h * bt + b)
        if bt == 1:
            nk_g = nk_ref[...]                                   # (H, Dh) f32
            nv_g = nv_ref[...]
        else:
            nk_g = jnp.broadcast_to(
                nk_ref[...][:, None, :], (heads, bt, dim_head)).reshape(groups, dim_head)
            nv_g = jnp.broadcast_to(
                nv_ref[...][:, None, :], (heads, bt, dim_head)).reshape(groups, dim_head)

        # ---------------- attention (all groups batched) ----------------
        sim = jnp.einsum('gnd,gmd->gnm', q3, k3,
                         preferred_element_type=jnp.float32)     # (G, N, N) f32
        # single null key handled analytically (keeps sim N x N, no concat)
        null_sim = jnp.sum(q3f * nk_g[:, None, :], axis=-1, keepdims=True)  # (G, N, 1)

        row_max = jnp.maximum(jnp.max(sim, axis=-1, keepdims=True), null_sim)
        p = jnp.exp(sim - row_max)                               # (G, N, N)
        p_null = jnp.exp(null_sim - row_max)                     # (G, N, 1)
        denom = jnp.sum(p, axis=-1, keepdims=True) + p_null

        ov = jnp.einsum('gnm,gmd->gnd', p.astype(compute_dtype), v3,
                        preferred_element_type=jnp.float32)      # (G, N, Dh) f32
        ov = ov + p_null * nv_g[:, None, :]
        ov = ov * pl.reciprocal(denom, approx=approx_recip)

        # ---------------- output projection (accumulated over heads) -------------
        ov_h = ov.reshape(heads, m_rows, dim_head).astype(compute_dtype)  # (H, M, Dh)
        o_h = jnp.einsum('hmd,hdk->hmk', ov_h, wo_ref[...],
                         preferred_element_type=jnp.float32)     # (H, M, D)
        o = jnp.sum(o_h, axis=0)                                 # (M, D)
        o_ref[...] = o.reshape(bt, seq, dim).astype(o_ref.dtype)

    return kernel


def _pick_block_b(batch, seq, dim, heads, dim_head,
                  vmem_budget_bytes=12 * 1024 * 1024):
    """Pick how many batch elements to process per grid step."""
    inner = heads * dim_head
    # conservative f32 working-set estimate per batch element
    per_b = 4 * ((3 + 2 * heads) * seq * dim
                 + 8 * seq * inner
                 + 2 * heads * seq * seq)
    cap = max(1, vmem_budget_bytes // max(per_b, 1))
    if batch >= 2:
        # keep at least two grid steps so both v7x TensorCores get work
        cap = min(cap, batch // 2)
    cap = int(max(1, min(cap, batch)))
    for cand in range(cap, 0, -1):
        if batch % cand == 0:
            return cand
    return 1


def attention_pallas(x, gamma, wq, wkv, wo, null_kv, heads, dim_head,
                     compute_dtype=jnp.bfloat16, block_b=None):
    """x: (B, N, D) float32. Returns (B, N, D)."""
    B, N, D = x.shape
    inner_dim = heads * dim_head

    if block_b is None:
        block_b = _pick_block_b(B, N, D, heads, dim_head)
    assert B % block_b == 0

    # Host-side layout plumbing (no math): split the fused kv weight, lay the
    # projection weights out head-major, cast matmul operands to compute dtype.
    gamma2 = gamma.reshape(1, D).astype(jnp.float32)
    wq3 = wq.reshape(D, heads, dim_head).transpose(1, 0, 2).astype(compute_dtype)
    wk3 = wkv[:, :inner_dim].reshape(D, heads, dim_head).transpose(1, 0, 2).astype(compute_dtype)
    wv3 = wkv[:, inner_dim:].reshape(D, heads, dim_head).transpose(1, 0, 2).astype(compute_dtype)
    wo3 = wo.reshape(heads, dim_head, D).astype(compute_dtype)
    nk = null_kv[0, :, 0, :].astype(jnp.float32)   # (H, Dh)
    nv = null_kv[1, :, 0, :].astype(jnp.float32)   # (H, Dh)

    kernel = make_attention_kernel(heads, dim_head, compute_dtype)
    grid = (B // block_b,)

    return pl.pallas_call(
        kernel,
        out_shape=jax.ShapeDtypeStruct((B, N, D), x.dtype),
        grid_spec=pltpu.PrefetchScalarGridSpec(
            num_scalar_prefetch=0,
            grid=grid,
            in_specs=[
                pl.BlockSpec((block_b, N, D), lambda b: (b, 0, 0)),        # x
                pl.BlockSpec((1, D), lambda b: (0, 0)),                    # gamma
                pl.BlockSpec((heads, D, dim_head), lambda b: (0, 0, 0)),   # wq (head-major)
                pl.BlockSpec((heads, D, dim_head), lambda b: (0, 0, 0)),   # wk
                pl.BlockSpec((heads, D, dim_head), lambda b: (0, 0, 0)),   # wv
                pl.BlockSpec((heads, dim_head, D), lambda b: (0, 0, 0)),   # wo
                pl.BlockSpec((heads, dim_head), lambda b: (0, 0)),         # null k
                pl.BlockSpec((heads, dim_head), lambda b: (0, 0)),         # null v
            ],
            out_specs=pl.BlockSpec((block_b, N, D), lambda b: (b, 0, 0)),
        ),
        compiler_params=pltpu.CompilerParams(
            dimension_semantics=("parallel",),
            vmem_limit_bytes=48 * 1024 * 1024,   # fits v7x (64 MiB) with headroom
        ),
    )(x, gamma2, wq3, wk3, wv3, wo3, nk, nv)


def attention_reference(x, gamma, wq, wkv, wo, null_kv, heads, dim_head):
    """Pure-JAX reference matching the PyTorch forward (no mask, self-attn)."""
    B, N, D = x.shape
    inner_dim = heads * dim_head
    scale = dim_head ** (-0.5)

    mean = jnp.mean(x, axis=-1, keepdims=True)
    var = jnp.mean((x - mean) ** 2, axis=-1, keepdims=True)
    xn = (x - mean) / jnp.sqrt(var + 1e-5) * gamma

    q = xn @ wq * scale
    kv = xn @ wkv
    k, v = kv[..., :inner_dim], kv[..., inner_dim:]

    def split_heads(t):
        return t.reshape(B, N, heads, dim_head).transpose(0, 2, 1, 3)

    q, k, v = map(split_heads, (q, k, v))                     # (B, H, N, Dh)
    nk = jnp.broadcast_to(null_kv[0][None], (B, heads, 1, dim_head))
    nv = jnp.broadcast_to(null_kv[1][None], (B, heads, 1, dim_head))
    k = jnp.concatenate([nk, k], axis=-2)
    v = jnp.concatenate([nv, v], axis=-2)

    sim = jnp.einsum('bhid,bhjd->bhij', q, k)
    attn = jax.nn.softmax(sim, axis=-1)
    out = jnp.einsum('bhij,bhjd->bhid', attn, v)
    out = out.transpose(0, 2, 1, 3).reshape(B, N, inner_dim)
    return out @ wo


if __name__ == "__main__":
    # Small shapes consistent with the module
    B, N, D = 2, 8, 32
    heads, dim_head = 2, 16
    inner_dim = heads * dim_head

    key = jax.random.PRNGKey(0)
    k_x, k_q, k_kv, k_o, k_null = jax.random.split(key, 5)

    x = jax.random.normal(k_x, (B, N, D), dtype=jnp.float32)
    gamma = jnp.ones((D,), dtype=jnp.float32)                              # LayerNorm.gamma
    wq = jax.random.normal(k_q, (D, inner_dim), dtype=jnp.float32) * 0.1   # to_q.weight.T
    wkv = jax.random.normal(k_kv, (D, 2 * inner_dim), dtype=jnp.float32) * 0.1  # to_kv.weight.T
    wo = jax.random.normal(k_o, (inner_dim, D), dtype=jnp.float32) * 0.1   # to_out.weight.T
    null_kv = jax.random.normal(k_null, (2, heads, 1, dim_head), dtype=jnp.float32)

    ref = attention_reference(x, gamma, wq, wkv, wo, null_kv, heads, dim_head)

    # 1) exact path (f32 matmuls) -- structural correctness check
    out_f32 = attention_pallas(x, gamma, wq, wkv, wo, null_kv, heads, dim_head,
                               compute_dtype=jnp.float32)
    out_f32 = jax.block_until_ready(out_f32)
    assert out_f32.shape == (B, N, D)
    assert jnp.allclose(out_f32, ref, atol=5e-4, rtol=5e-4), "f32 kernel mismatch vs reference"

    # 2) fast path (bf16 MXU operands, f32 accumulation)
    out_bf16 = attention_pallas(x, gamma, wq, wkv, wo, null_kv, heads, dim_head,
                                compute_dtype=jnp.bfloat16)
    out_bf16 = jax.block_until_ready(out_bf16)
    assert out_bf16.shape == (B, N, D)
    assert jnp.allclose(out_bf16, ref, atol=3e-2, rtol=3e-2), "bf16 kernel mismatch vs reference"

    print("KERNEL_OK")
</pallas_src>

<mosaic_0001>
module attributes {stable_mosaic.version = 11 : i64} {
  func.func @kernel(%arg0: i32, %arg1: memref<1x8x32xf32, #tpu.memory_space<vmem>>, %arg2: memref<1x32xf32, #tpu.memory_space<vmem>>, %arg3: memref<2x32x16xf32, #tpu.memory_space<vmem>>, %arg4: memref<2x32x16xf32, #tpu.memory_space<vmem>>, %arg5: memref<2x32x16xf32, #tpu.memory_space<vmem>>, %arg6: memref<2x16x32xf32, #tpu.memory_space<vmem>>, %arg7: memref<2x16xf32, #tpu.memory_space<vmem>>, %arg8: memref<2x16xf32, #tpu.memory_space<vmem>>, %arg9: memref<1x8x32xf32, #tpu.memory_space<vmem>>) attributes {dimension_semantics = [#tpu.dimension_semantics<parallel>], iteration_bounds = array<i64: 2>, scalar_prefetch = 0 : i64, scratch_operands = 0 : i64, tpu.core_type = #tpu.core_type<tc>, window_params = [{transform_indices = @transform_0, window_bounds = array<i64: 1, 8, 32>}, {pipeline_mode = #tpu.pipeline_mode<synchronous>, transform_indices = @transform_1, window_bounds = array<i64: 1, 32>}, {pipeline_mode = #tpu.pipeline_mode<synchronous>, transform_indices = @transform_2, window_bounds = array<i64: 2, 32, 16>}, {pipeline_mode = #tpu.pipeline_mode<synchronous>, transform_indices = @transform_3, window_bounds = array<i64: 2, 32, 16>}, {pipeline_mode = #tpu.pipeline_mode<synchronous>, transform_indices = @transform_4, window_bounds = array<i64: 2, 32, 16>}, {pipeline_mode = #tpu.pipeline_mode<synchronous>, transform_indices = @transform_5, window_bounds = array<i64: 2, 16, 32>}, {pipeline_mode = #tpu.pipeline_mode<synchronous>, transform_indices = @transform_6, window_bounds = array<i64: 2, 16>}, {pipeline_mode = #tpu.pipeline_mode<synchronous>, transform_indices = @transform_7, window_bounds = array<i64: 2, 16>}, {transform_indices = @transform_8, window_bounds = array<i64: 1, 8, 32>}]} {
    %c0 = arith.constant 0 : index
    %c0_0 = arith.constant 0 : index
    %c0_1 = arith.constant 0 : index
    %0 = vector.load %arg1[%c0, %c0_0, %c0_1] : memref<1x8x32xf32, #tpu.memory_space<vmem>>, vector<1x8x32xf32>
    %1 = vector.shape_cast %0 : vector<1x8x32xf32> to vector<8x32xf32>
    %c0_2 = arith.constant 0 : index
    %c0_3 = arith.constant 0 : index
    %2 = vector.load %arg2[%c0_2, %c0_3] : memref<1x32xf32, #tpu.memory_space<vmem>>, vector<1x32xf32>
    %cst = arith.constant dense<0.000000e+00> : vector<8xf32>
    %3 = vector.multi_reduction <add>, %1, %cst [1] : vector<8x32xf32> to vector<8xf32>
    %4 = vector.shape_cast %3 : vector<8xf32> to vector<8x1xf32>
    %cst_4 = arith.constant 3.200000e+01 : f32
    %5 = vector.broadcast %cst_4 : f32 to vector<8x1xf32>
    %6 = arith.divf %4, %5 : vector<8x1xf32>
    %7 = vector.broadcast %6 : vector<8x1xf32> to vector<8x32xf32>
    %8 = arith.subf %1, %7 : vector<8x32xf32>
    %9 = arith.mulf %8, %8 : vector<8x32xf32>
    %cst_5 = arith.constant dense<0.000000e+00> : vector<8xf32>
    %10 = vector.multi_reduction <add>, %9, %cst_5 [1] : vector<8x32xf32> to vector<8xf32>
    %11 = vector.shape_cast %10 : vector<8xf32> to vector<8x1xf32>
    %cst_6 = arith.constant 3.200000e+01 : f32
    %12 = vector.broadcast %cst_6 : f32 to vector<8x1xf32>
    %13 = arith.divf %11, %12 : vector<8x1xf32>
    %14 = vector.broadcast %6 : vector<8x1xf32> to vector<8x32xf32>
    %15 = arith.subf %1, %14 : vector<8x32xf32>
    %cst_7 = arith.constant 9.99999974E-6 : f32
    %16 = vector.broadcast %cst_7 : f32 to vector<8x1xf32>
    %17 = arith.addf %13, %16 : vector<8x1xf32>
    %18 = math.rsqrt %17 : vector<8x1xf32>
    %19 = vector.broadcast %18 : vector<8x1xf32> to vector<8x32xf32>
    %20 = arith.mulf %15, %19 : vector<8x32xf32>
    %21 = vector.broadcast %2 : vector<1x32xf32> to vector<8x32xf32>
    %22 = arith.mulf %20, %21 : vector<8x32xf32>
    %23 = vector.shape_cast %22 : vector<8x32xf32> to vector<1x8x32xf32>
    %24 = vector.shape_cast %23 : vector<1x8x32xf32> to vector<1x8x32xf32>
    %25 = vector.broadcast %24 : vector<1x8x32xf32> to vector<2x8x32xf32>
    %c0_8 = arith.constant 0 : index
    %c0_9 = arith.constant 0 : index
    %c0_10 = arith.constant 0 : index
    %26 = vector.load %arg3[%c0_8, %c0_9, %c0_10] : memref<2x32x16xf32, #tpu.memory_space<vmem>>, vector<2x32x16xf32>
    "tpu.trace_start"() <{level = 10 : i32, message = "hmd,hdk->hmk"}> : () -> ()
    %cst_11 = arith.constant dense<0.000000e+00> : vector<2x8x16xf32>
    %27 = tpu.matmul %25, %26, %cst_11 {dimension_numbers = #tpu.dot_dimension_numbers<[2], [1], [1], [2], [0, 0, 0, 1, 1, 2], [0], [0]>} : vector<2x8x32xf32>, vector<2x32x16xf32>, vector<2x8x16xf32> -> vector<2x8x16xf32>
    "tpu.trace_stop"() : () -> ()
    %cst_12 = arith.constant 2.500000e-01 : f32
    %28 = vector.broadcast %cst_12 : f32 to vector<2x8x16xf32>
    %29 = arith.mulf %27, %28 : vector<2x8x16xf32>
    %c0_13 = arith.constant 0 : index
    %c0_14 = arith.constant 0 : index
    %c0_15 = arith.constant 0 : index
    %30 = vector.load %arg4[%c0_13, %c0_14, %c0_15] : memref<2x32x16xf32, #tpu.memory_space<vmem>>, vector<2x32x16xf32>
    "tpu.trace_start"() <{level = 10 : i32, message = "hmd,hdk->hmk"}> : () -> ()
    %cst_16 = arith.constant dense<0.000000e+00> : vector<2x8x16xf32>
    %31 = tpu.matmul %25, %30, %cst_16 {dimension_numbers = #tpu.dot_dimension_numbers<[2], [1], [1], [2], [0, 0, 0, 1, 1, 2], [0], [0]>} : vector<2x8x32xf32>, vector<2x32x16xf32>, vector<2x8x16xf32> -> vector<2x8x16xf32>
    "tpu.trace_stop"() : () -> ()
    %c0_17 = arith.constant 0 : index
    %c0_18 = arith.constant 0 : index
    %c0_19 = arith.constant 0 : index
    %32 = vector.load %arg5[%c0_17, %c0_18, %c0_19] : memref<2x32x16xf32, #tpu.memory_space<vmem>>, vector<2x32x16xf32>
    "tpu.trace_start"() <{level = 10 : i32, message = "hmd,hdk->hmk"}> : () -> ()
    %cst_20 = arith.constant dense<0.000000e+00> : vector<2x8x16xf32>
    %33 = tpu.matmul %25, %32, %cst_20 {dimension_numbers = #tpu.dot_dimension_numbers<[2], [1], [1], [2], [0, 0, 0, 1, 1, 2], [0], [0]>} : vector<2x8x32xf32>, vector<2x32x16xf32>, vector<2x8x16xf32> -> vector<2x8x16xf32>
    "tpu.trace_stop"() : () -> ()
    %c0_21 = arith.constant 0 : index
    %c0_22 = arith.constant 0 : index
    %34 = vector.load %arg7[%c0_21, %c0_22] : memref<2x16xf32, #tpu.memory_space<vmem>>, vector<2x16xf32>
    %c0_23 = arith.constant 0 : index
    %c0_24 = arith.constant 0 : index
    %35 = vector.load %arg8[%c0_23, %c0_24] : memref<2x16xf32, #tpu.memory_space<vmem>>, vector<2x16xf32>
    "tpu.trace_start"() <{level = 10 : i32, message = "gnd,gmd->gnm"}> : () -> ()
    %cst_25 = arith.constant dense<0.000000e+00> : vector<2x8x8xf32>
    %36 = tpu.matmul %29, %31, %cst_25 {dimension_numbers = #tpu.dot_dimension_numbers<[2], [2], [1], [1], [0, 0, 0, 1, 1, 1], [0], [0]>} : vector<2x8x16xf32>, vector<2x8x16xf32>, vector<2x8x8xf32> -> vector<2x8x8xf32>
    "tpu.trace_stop"() : () -> ()
    %37 = vector.shape_cast %34 : vector<2x16xf32> to vector<2x1x16xf32>
    %38 = vector.broadcast %37 : vector<2x1x16xf32> to vector<2x8x16xf32>
    %39 = arith.mulf %29, %38 : vector<2x8x16xf32>
    %cst_26 = arith.constant dense<0.000000e+00> : vector<2x8xf32>
    %40 = vector.multi_reduction <add>, %39, %cst_26 [2] : vector<2x8x16xf32> to vector<2x8xf32>
    %41 = vector.shape_cast %40 : vector<2x8xf32> to vector<2x8x1xf32>
    %cst_27 = arith.constant dense<0xFF800000> : vector<2x8xf32>
    %42 = vector.multi_reduction <maximumf>, %36, %cst_27 [2] : vector<2x8x8xf32> to vector<2x8xf32>
    %43 = vector.shape_cast %42 : vector<2x8xf32> to vector<2x8x1xf32>
    %44 = arith.maximumf %43, %41 : vector<2x8x1xf32>
    %45 = vector.broadcast %44 : vector<2x8x1xf32> to vector<2x8x8xf32>
    %46 = arith.subf %36, %45 : vector<2x8x8xf32>
    %47 = math.exp %46 : vector<2x8x8xf32>
    %48 = arith.subf %41, %44 : vector<2x8x1xf32>
    %49 = math.exp %48 : vector<2x8x1xf32>
    %cst_28 = arith.constant dense<0.000000e+00> : vector<2x8xf32>
    %50 = vector.multi_reduction <add>, %47, %cst_28 [2] : vector<2x8x8xf32> to vector<2x8xf32>
    %51 = vector.shape_cast %50 : vector<2x8xf32> to vector<2x8x1xf32>
    %52 = arith.addf %51, %49 : vector<2x8x1xf32>
    "tpu.trace_start"() <{level = 10 : i32, message = "gnm,gmd->gnd"}> : () -> ()
    %cst_29 = arith.constant dense<0.000000e+00> : vector<2x8x16xf32>
    %53 = tpu.matmul %47, %33, %cst_29 {dimension_numbers = #tpu.dot_dimension_numbers<[2], [1], [1], [2], [0, 0, 0, 1, 1, 2], [0], [0]>} : vector<2x8x8xf32>, vector<2x8x16xf32>, vector<2x8x16xf32> -> vector<2x8x16xf32>
    "tpu.trace_stop"() : () -> ()
    %54 = vector.shape_cast %35 : vector<2x16xf32> to vector<2x1x16xf32>
    %55 = vector.broadcast %49 : vector<2x8x1xf32> to vector<2x8x16xf32>
    %56 = vector.broadcast %54 : vector<2x1x16xf32> to vector<2x8x16xf32>
    %57 = arith.mulf %55, %56 : vector<2x8x16xf32>
    %58 = arith.addf %53, %57 : vector<2x8x16xf32>
    %59 = tpu.reciprocal %52 : vector<2x8x1xf32> -> vector<2x8x1xf32>
    %60 = vector.broadcast %59 : vector<2x8x1xf32> to vector<2x8x16xf32>
    %61 = arith.mulf %58, %60 : vector<2x8x16xf32>
    %c0_30 = arith.constant 0 : index
    %c0_31 = arith.constant 0 : index
    %c0_32 = arith.constant 0 : index
    %62 = vector.load %arg6[%c0_30, %c0_31, %c0_32] : memref<2x16x32xf32, #tpu.memory_space<vmem>>, vector<2x16x32xf32>
    "tpu.trace_start"() <{level = 10 : i32, message = "hmd,hdk->hmk"}> : () -> ()
    %cst_33 = arith.constant dense<0.000000e+00> : vector<2x8x32xf32>
    %63 = tpu.matmul %61, %62, %cst_33 {dimension_numbers = #tpu.dot_dimension_numbers<[2], [1], [1], [2], [0, 0, 0, 1, 1, 2], [0], [0]>} : vector<2x8x16xf32>, vector<2x16x32xf32>, vector<2x8x32xf32> -> vector<2x8x32xf32>
    "tpu.trace_stop"() : () -> ()
    %cst_34 = arith.constant dense<0.000000e+00> : vector<8x32xf32>
    %64 = vector.multi_reduction <add>, %63, %cst_34 [0] : vector<2x8x32xf32> to vector<8x32xf32>
    %65 = vector.shape_cast %64 : vector<8x32xf32> to vector<1x8x32xf32>
    %c0_35 = arith.constant 0 : index
    %c0_36 = arith.constant 0 : index
    %c0_37 = arith.constant 0 : index
    %66 = vector.load %arg9[%c0_35, %c0_36, %c0_37] : memref<1x8x32xf32, #tpu.memory_space<vmem>>, vector<1x8x32xf32>
    tpu.vector_store %arg9[%c0_35, %c0_36, %c0_37], %65 {strides = array<i32>} : memref<1x8x32xf32, #tpu.memory_space<vmem>>, vector<1x8x32xf32>,
    return
  }
  func.func @transform_0(%arg0: i32) -> (i32, i32, i32) {
    %c0_i32 = arith.constant 0 : i32
    %c0_i32_0 = arith.constant 0 : i32
    %c0_i32_1 = arith.constant 0 : i32
    return %arg0, %c0_i32, %c0_i32_0 : i32, i32, i32
  }
  func.func @transform_1(%arg0: i32) -> (i32, i32) {
    %c0_i32 = arith.constant 0 : i32
    %c0_i32_0 = arith.constant 0 : i32
    %c0_i32_1 = arith.constant 0 : i32
    return %c0_i32, %c0_i32_0 : i32, i32
  }
  func.func @transform_2(%arg0: i32) -> (i32, i32, i32) {
    %c0_i32 = arith.constant 0 : i32
    %c0_i32_0 = arith.constant 0 : i32
    %c0_i32_1 = arith.constant 0 : i32
    %c0_i32_2 = arith.constant 0 : i32
    return %c0_i32, %c0_i32_0, %c0_i32_1 : i32, i32, i32
  }
  func.func @transform_3(%arg0: i32) -> (i32, i32, i32) {
    %c0_i32 = arith.constant 0 : i32
    %c0_i32_0 = arith.constant 0 : i32
    %c0_i32_1 = arith.constant 0 : i32
    %c0_i32_2 = arith.constant 0 : i32
    return %c0_i32, %c0_i32_0, %c0_i32_1 : i32, i32, i32
  }
  func.func @transform_4(%arg0: i32) -> (i32, i32, i32) {
    %c0_i32 = arith.constant 0 : i32
    %c0_i32_0 = arith.constant 0 : i32
    %c0_i32_1 = arith.constant 0 : i32
    %c0_i32_2 = arith.constant 0 : i32
    return %c0_i32, %c0_i32_0, %c0_i32_1 : i32, i32, i32
  }
  func.func @transform_5(%arg0: i32) -> (i32, i32, i32) {
    %c0_i32 = arith.constant 0 : i32
    %c0_i32_0 = arith.constant 0 : i32
    %c0_i32_1 = arith.constant 0 : i32
    %c0_i32_2 = arith.constant 0 : i32
    return %c0_i32, %c0_i32_0, %c0_i32_1 : i32, i32, i32
  }
  func.func @transform_6(%arg0: i32) -> (i32, i32) {
    %c0_i32 = arith.constant 0 : i32
    %c0_i32_0 = arith.constant 0 : i32
    %c0_i32_1 = arith.constant 0 : i32
    return %c0_i32, %c0_i32_0 : i32, i32
  }
  func.func @transform_7(%arg0: i32) -> (i32, i32) {
    %c0_i32 = arith.constant 0 : i32
    %c0_i32_0 = arith.constant 0 : i32
    %c0_i32_1 = arith.constant 0 : i32
    return %c0_i32, %c0_i32_0 : i32, i32
  }
  func.func @transform_8(%arg0: i32) -> (i32, i32, i32) {
    %c0_i32 = arith.constant 0 : i32
    %c0_i32_0 = arith.constant 0 : i32
    %c0_i32_1 = arith.constant 0 : i32
    return %arg0, %c0_i32, %c0_i32_0 : i32, i32, i32
  }
}

</mosaic_0001>

<llo_original>
// kernel: tpu_custom_call.1
$region0: #{tpu_custom_call.1}
  #allocation0 [shape = 'u32[]', space=smem, size = 0x4, offset = 0x4, fixed_abs, tag = 'smem constant byte address 0x4 - core index']
  #allocation1 [shape = 'u32[144,128]{1,0:T(1,128)}', space=vmem, size = 0x12000, scoped, tag = 'internal scratch']
  %s0 = inlined_call_operand.vmem [shape: f32[2,8,32], index: 0, kind: input, shape index: {}]
  %s1 = inlined_call_operand.vmem [shape: f32[1,32], index: 1, kind: input, shape index: {}]
  %s2 = inlined_call_operand.vmem [shape: f32[2,32,16], index: 2, kind: input, shape index: {}]
  %s3 = inlined_call_operand.vmem [shape: f32[2,32,16], index: 3, kind: input, shape index: {}]
  %s4 = inlined_call_operand.vmem [shape: f32[2,32,16], index: 4, kind: input, shape index: {}]
  %s5 = inlined_call_operand.vmem [shape: f32[2,16,32], index: 5, kind: input, shape index: {}]
  %s6 = inlined_call_operand.vmem [shape: f32[2,16], index: 6, kind: input, shape index: {}]
  %s7 = inlined_call_operand.vmem [shape: f32[2,16], index: 7, kind: input, shape index: {}]
  %s8 = inlined_call_operand.hbm [shape: f32[2,8,32], index: 8, kind: output, shape index: {}]
  %s9 = sld [smem:[#allocation0]]
  $region65: #{tpu_custom_call.1} parent=0
    _
  %s11 = ssub.s32 1, %s9
  %s12 = scalar_select 0, %s11, %s9
  $region1: #{tpu_custom_call.1} parent=0
    #allocation2 [shape = 'u8[8192]{0}', space=vmem, size = 0x2000, scoped, tag = 'output window, operand 0']
    #allocation3 [shape = 's32[2]{0}', space=sflag, size = 0x8, scoped, tag = 'scoped memory for tpu_custom_call.1']
    %13 = vsyncpa [#allocation3], 0
    %s14 = scalar_lea.sflag [#allocation3], 1
    %15 = vsyncpa %s14, 0
    loop: start=0, step=1, limit=4
    $region2: #{tpu_custom_call.1} parent=1 // loop_pre_header
      _
    $region3: #{tpu_custom_call.1} parent=1 // loop_header
      %s17 = sphi 0, %s21
      %p18 = scmp.ge.s32.totalorder %s17, 4
      %s27 = sphi 0, %s29
      %s30 = sphi 0, %s27
      %s31 = sphi 0, %s30
      %s47 = sphi 0, %s31
      %s51 = sphi 0, %s51
      %s53 = sphi 0, %s51
      %s54 = sphi 0, %s53
      %s68 = sphi 0, %s54
      %s72 = sphi 0, %s72
      %s74 = sphi 0, %s72
      %s75 = sphi 0, %s74
      %s89 = sphi 0, %s75
      %s93 = sphi 0, %s93
      %s95 = sphi 0, %s93
      %s96 = sphi 0, %s95
      %s110 = sphi 0, %s96
      %s114 = sphi 0, %s114
      %s116 = sphi 0, %s114
      %s117 = sphi 0, %s116
      %s131 = sphi 0, %s117
      %s135 = sphi 0, %s135
      %s137 = sphi 0, %s135
      %s138 = sphi 0, %s137
      %s152 = sphi 0, %s138
      %s156 = sphi 0, %s156
      %s158 = sphi 0, %s156
      %s159 = sphi 0, %s158
      %s173 = sphi 0, %s159
      %s177 = sphi 0, %s177
      %s179 = sphi 0, %s177
      %s180 = sphi 0, %s179
      %s194 = sphi 0, %s180
      %s200 = sphi 0, %s202
      %s203 = sphi 0, %s200
      %s204 = sphi 0, %s203
      %s220 = sphi 0, %s204
    $region4: #{tpu_custom_call.1} parent=1 // loop_header_branch
      %20 = sbr.rel (%p18) target = $region8
    $region5: #{tpu_custom_call.1} parent=1 // loop_body
      %s22 = ssub.s32 %s17, 1
      %s23 = ssub.s32 %s17, 2
      %s24 = sadd.s32 %s17, 1
      %s25 = ssub.s32 %s17, %s24
      %p26 = scmp.eq.s32.totalorder %s25, 0
      %s28 = sadd.s32 %s27, 1
      %s29 = scalar_select %p26, %s27, %s28
      %p32 = pneg %p26
      %p33 = scmp.eq.s32.totalorder %s17, 1
      %p34 = por %p32, %p33
      %p35 = scmp.ne.s32.totalorder %s27, %s30
      %p36 = scmp.eq.s32.totalorder %s17, 0
      %p37 = por %p35, %p36
      %p38 = scmp.ne.s32.totalorder %s27, %s30
      %p39 = scmp.eq.s32.totalorder %s22, 1
      %p40 = por %p38, %p39
      %p41 = scmp.ne.s32.totalorder %s30, %s31
      %p42 = scmp.eq.s32.totalorder %s22, 0
      %p43 = por %p41, %p42
      %p44 = scmp.ne.s32.totalorder %s30, %s31
      %p45 = scmp.eq.s32.totalorder %s23, 1
      %p46 = por %p44, %p45
      %p48 = scmp.ne.s32.totalorder %s31, %s47
      %p49 = scmp.eq.s32.totalorder %s23, 0
      %p50 = por %p48, %p49
      %s52 = sadd.s32 %s51, 1
      %p55 = scmp.eq.s32.totalorder %s17, 1
      %p56 = scmp.ne.s32.totalorder %s51, %s53
      %p57 = scmp.eq.s32.totalorder %s17, 0
      %p58 = por %p56, %p57
      %p59 = scmp.ne.s32.totalorder %s51, %s53
      %p60 = scmp.eq.s32.totalorder %s22, 1
      %p61 = por %p59, %p60
      %p62 = scmp.ne.s32.totalorder %s53, %s54
      %p63 = scmp.eq.s32.totalorder %s22, 0
      %p64 = por %p62, %p63
      %p65 = scmp.ne.s32.totalorder %s53, %s54
      %p66 = scmp.eq.s32.totalorder %s23, 1
      %p67 = por %p65, %p66
      %p69 = scmp.ne.s32.totalorder %s54, %s68
      %p70 = scmp.eq.s32.totalorder %s23, 0
      %p71 = por %p69, %p70
      %s73 = sadd.s32 %s72, 1
      %p76 = scmp.eq.s32.totalorder %s17, 1
      %p77 = scmp.ne.s32.totalorder %s72, %s74
      %p78 = scmp.eq.s32.totalorder %s17, 0
      %p79 = por %p77, %p78
      %p80 = scmp.ne.s32.totalorder %s72, %s74
      %p81 = scmp.eq.s32.totalorder %s22, 1
      %p82 = por %p80, %p81
      %p83 = scmp.ne.s32.totalorder %s74, %s75
      %p84 = scmp.eq.s32.totalorder %s22, 0
      %p85 = por %p83, %p84
      %p86 = scmp.ne.s32.totalorder %s74, %s75
      %p87 = scmp.eq.s32.totalorder %s23, 1
      %p88 = por %p86, %p87
      %p90 = scmp.ne.s32.totalorder %s75, %s89
      %p91 = scmp.eq.s32.totalorder %s23, 0
      %p92 = por %p90, %p91
      %s94 = sadd.s32 %s93, 1
      %p97 = scmp.eq.s32.totalorder %s17, 1
      %p98 = scmp.ne.s32.totalorder %s93, %s95
      %p99 = scmp.eq.s32.totalorder %s17, 0
      %p100 = por %p98, %p99
      %p101 = scmp.ne.s32.totalorder %s93, %s95
      %p102 = scmp.eq.s32.totalorder %s22, 1
      %p103 = por %p101, %p102
      %p104 = scmp.ne.s32.totalorder %s95, %s96
      %p105 = scmp.eq.s32.totalorder %s22, 0
      %p106 = por %p104, %p105
      %p107 = scmp.ne.s32.totalorder %s95, %s96
      %p108 = scmp.eq.s32.totalorder %s23, 1
      %p109 = por %p107, %p108
      %p111 = scmp.ne.s32.totalorder %s96, %s110
      %p112 = scmp.eq.s32.totalorder %s23, 0
      %p113 = por %p111, %p112
      %s115 = sadd.s32 %s114, 1
      %p118 = scmp.eq.s32.totalorder %s17, 1
      %p119 = scmp.ne.s32.totalorder %s114, %s116
      %p120 = scmp.eq.s32.totalorder %s17, 0
      %p121 = por %p119, %p120
      %p122 = scmp.ne.s32.totalorder %s114, %s116
      %p123 = scmp.eq.s32.totalorder %s22, 1
      %p124 = por %p122, %p123
      %p125 = scmp.ne.s32.totalorder %s116, %s117
      %p126 = scmp.eq.s32.totalorder %s22, 0
      %p127 = por %p125, %p126
      %p128 = scmp.ne.s32.totalorder %s116, %s117
      %p129 = scmp.eq.s32.totalorder %s23, 1
      %p130 = por %p128, %p129
      %p132 = scmp.ne.s32.totalorder %s117, %s131
      %p133 = scmp.eq.s32.totalorder %s23, 0
      %p134 = por %p132, %p133
      %s136 = sadd.s32 %s135, 1
      %p139 = scmp.eq.s32.totalorder %s17, 1
      %p140 = scmp.ne.s32.totalorder %s135, %s137
      %p141 = scmp.eq.s32.totalorder %s17, 0
      %p142 = por %p140, %p141
      %p143 = scmp.ne.s32.totalorder %s135, %s137
      %p144 = scmp.eq.s32.totalorder %s22, 1
      %p145 = por %p143, %p144
      %p146 = scmp.ne.s32.totalorder %s137, %s138
      %p147 = scmp.eq.s32.totalorder %s22, 0
      %p148 = por %p146, %p147
      %p149 = scmp.ne.s32.totalorder %s137, %s138
      %p150 = scmp.eq.s32.totalorder %s23, 1
      %p151 = por %p149, %p150
      %p153 = scmp.ne.s32.totalorder %s138, %s152
      %p154 = scmp.eq.s32.totalorder %s23, 0
      %p155 = por %p153, %p154
      %s157 = sadd.s32 %s156, 1
      %p160 = scmp.eq.s32.totalorder %s17, 1
      %p161 = scmp.ne.s32.totalorder %s156, %s158
      %p162 = scmp.eq.s32.totalorder %s17, 0
      %p163 = por %p161, %p162
      %p164 = scmp.ne.s32.totalorder %s156, %s158
      %p165 = scmp.eq.s32.totalorder %s22, 1
      %p166 = por %p164, %p165
      %p167 = scmp.ne.s32.totalorder %s158, %s159
      %p168 = scmp.eq.s32.totalorder %s22, 0
      %p169 = por %p167, %p168
      %p170 = scmp.ne.s32.totalorder %s158, %s159
      %p171 = scmp.eq.s32.totalorder %s23, 1
      %p172 = por %p170, %p171
      %p174 = scmp.ne.s32.totalorder %s159, %s173
      %p175 = scmp.eq.s32.totalorder %s23, 0
      %p176 = por %p174, %p175
      %s178 = sadd.s32 %s177, 1
      %p181 = scmp.eq.s32.totalorder %s17, 1
      %p182 = scmp.ne.s32.totalorder %s177, %s179
      %p183 = scmp.eq.s32.totalorder %s17, 0
      %p184 = por %p182, %p183
      %p185 = scmp.ne.s32.totalorder %s177, %s179
      %p186 = scmp.eq.s32.totalorder %s22, 1
      %p187 = por %p185, %p186
      %p188 = scmp.ne.s32.totalorder %s179, %s180
      %p189 = scmp.eq.s32.totalorder %s22, 0
      %p190 = por %p188, %p189
      %p191 = scmp.ne.s32.totalorder %s179, %s180
      %p192 = scmp.eq.s32.totalorder %s23, 1
      %p193 = por %p191, %p192
      %p195 = scmp.ne.s32.totalorder %s180, %s194
      %p196 = scmp.eq.s32.totalorder %s23, 0
      %p197 = por %p195, %p196
      %s198 = ssub.s32 %s17, %s24
      %p199 = scmp.eq.s32.totalorder %s198, 0
      %s201 = sadd.s32 %s200, 1
      %s202 = scalar_select %p199, %s200, %s201
      %p205 = pneg %p199
      %p206 = scmp.eq.s32.totalorder %s17, 1
      %p207 = por %p205, %p206
      %p208 = scmp.ne.s32.totalorder %s200, %s203
      %p209 = scmp.eq.s32.totalorder %s17, 0
      %p210 = por %p208, %p209
      %p211 = scmp.ne.s32.totalorder %s200, %s203
      %p212 = scmp.eq.s32.totalorder %s22, 1
      %p213 = por %p211, %p212
      %p214 = scmp.ne.s32.totalorder %s203, %s204
      %p215 = scmp.eq.s32.totalorder %s22, 0
      %p216 = por %p214, %p215
      %p217 = scmp.ne.s32.totalorder %s203, %s204
      %p218 = scmp.eq.s32.totalorder %s23, 1
      %p219 = por %p217, %p218
      %p221 = scmp.ne.s32.totalorder %s204, %s220
      %p222 = scmp.eq.s32.totalorder %s23, 0
      %p223 = por %p221, %p222
      %p224 = scmp.le.s32.totalorder 1, %s17
      %p225 = scmp.lt.s32.totalorder %s17, 3
      %p226 = pnand %p224, %p225
      %p227 = pneg %p226
      // Predicated region
      $region9: #{tpu_custom_call.1} parent=5 // pred_check
        _
      $region10: #{tpu_custom_call.1} parent=5 // pred_check_branch
        %229 = sbr.rel (%p226) target = $region12
      $region11: #{tpu_custom_call.1} parent=5 // pred_region
        %s230 = ssub.s32 %s17, 1
        // Predicated region
        $region13: #{tpu_custom_call.1} parent=11 // pred_check
          %p231 = pneg %p64
        $region14: #{tpu_custom_call.1} parent=11 // pred_check_branch
          %233 = sbr.rel (%p231) target = $region16
        $region15: #{tpu_custom_call.1} parent=11 // pred_region
          _
        $region16: #{tpu_custom_call.1} parent=11 // pred_fallthru
          _
        // Predicated region
        $region17: #{tpu_custom_call.1} parent=11 // pred_check
          %p234 = pneg %p85
        $region18: #{tpu_custom_call.1} parent=11 // pred_check_branch
          %236 = sbr.rel (%p234) target = $region20
        $region19: #{tpu_custom_call.1} parent=11 // pred_region
          _
        $region20: #{tpu_custom_call.1} parent=11 // pred_fallthru
          _
        // Predicated region
        $region21: #{tpu_custom_call.1} parent=11 // pred_check
          %p237 = pneg %p106
        $region22: #{tpu_custom_call.1} parent=11 // pred_check_branch
          %239 = sbr.rel (%p237) target = $region24
        $region23: #{tpu_custom_call.1} parent=11 // pred_region
          _
        $region24: #{tpu_custom_call.1} parent=11 // pred_fallthru
          _
        // Predicated region
        $region25: #{tpu_custom_call.1} parent=11 // pred_check
          %p240 = pneg %p127
        $region26: #{tpu_custom_call.1} parent=11 // pred_check_branch
          %242 = sbr.rel (%p240) target = $region28
        $region27: #{tpu_custom_call.1} parent=11 // pred_region
          _
        $region28: #{tpu_custom_call.1} parent=11 // pred_fallthru
          _
        // Predicated region
        $region29: #{tpu_custom_call.1} parent=11 // pred_check
          %p243 = pneg %p148
        $region30: #{tpu_custom_call.1} parent=11 // pred_check_branch
          %245 = sbr.rel (%p243) target = $region32
        $region31: #{tpu_custom_call.1} parent=11 // pred_region
          _
        $region32: #{tpu_custom_call.1} parent=11 // pred_fallthru
          _
        // Predicated region
        $region33: #{tpu_custom_call.1} parent=11 // pred_check
          %p246 = pneg %p169
        $region34: #{tpu_custom_call.1} parent=11 // pred_check_branch
          %248 = sbr.rel (%p246) target = $region36
        $region35: #{tpu_custom_call.1} parent=11 // pred_region
          _
        $region36: #{tpu_custom_call.1} parent=11 // pred_fallthru
          _
        // Predicated region
        $region37: #{tpu_custom_call.1} parent=11 // pred_check
          %p249 = pneg %p190
        $region38: #{tpu_custom_call.1} parent=11 // pred_check_branch
          %251 = sbr.rel (%p249) target = $region40
        $region39: #{tpu_custom_call.1} parent=11 // pred_region
          _
        $region40: #{tpu_custom_call.1} parent=11 // pred_fallthru
          _
      $region12: #{tpu_custom_call.1} parent=5 // pred_fallthru
        _
      %p252 = scmp.lt.s32.totalorder %s17, 2
      // Predicated region
      $region41: #{tpu_custom_call.1} parent=5 // pred_check
        %p253 = pneg %p252
      $region42: #{tpu_custom_call.1} parent=5 // pred_check_branch
        %255 = sbr.rel (%p253) target = $region44
      $region43: #{tpu_custom_call.1} parent=5 // pred_region
        // Predicated region
        $region45: #{tpu_custom_call.1} parent=43 // pred_check
          %p256 = pneg %p37
        $region46: #{tpu_custom_call.1} parent=43 // pred_check_branch
          %258 = sbr.rel (%p256) target = $region48
        $region47: #{tpu_custom_call.1} parent=43 // pred_region
          %p259 = scmp.lt.s32.totalorder %s17, 1
          %s260 = scalar_select %p259, %s17, 1
          %s261 = smul.addr %s260, 8
          %s262 = scalar_lea.vmem %s0, %s261
        $region48: #{tpu_custom_call.1} parent=43 // pred_fallthru
          _
      $region44: #{tpu_custom_call.1} parent=5 // pred_fallthru
        _
      %p263 = scmp.le.s32.totalorder 1, %s17
      %p264 = scmp.lt.s32.totalorder %s17, 3
      %p265 = pnand %p263, %p264
      %p266 = pneg %p265
      // Predicated region
      $region49: #{tpu_custom_call.1} parent=5 // pred_check
        _
      $region50: #{tpu_custom_call.1} parent=5 // pred_check_branch
        %268 = sbr.rel (%p265) target = $region52
      $region51: #{tpu_custom_call.1} parent=5 // pred_region
        %s269 = ssub.s32 %s17, 1
        %p270 = scmp.lt.s32.totalorder %s22, 1
        %s271 = scalar_select %p270, %s22, 1
        %s272 = smul.addr %s271, 8
        %s273 = scalar_lea.vmem %s0, %s272
        %p274 = pneg %p43
        %p275 = pneg %p40
        %p276 = pneg %p64
        %p277 = pneg %p61
        %p278 = pneg %p85
        %p279 = pneg %p82
        %p280 = pneg %p106
        %p281 = pneg %p103
        %p282 = pneg %p127
        %p283 = pneg %p124
        %p284 = pneg %p148
        %p285 = pneg %p145
        %p286 = pneg %p169
        %p287 = pneg %p166
        %p288 = pneg %p190
        %p289 = pneg %p187
        %p290 = pneg %p216
        %p291 = pneg %p213
        %s292 = sand.u32 %s203, 1
        %s293 = scalar_lea.sflag [#allocation3], %s292
        %s294 = sand.u32 %s203, 1
        %s295 = smul.addr %s294, 8
        %s296 = scalar_lea.vmem [#allocation2], %s295
        %p297 = scmp.lt.s32.totalorder %s22, 1
        %s298 = scalar_select %p297, %s22, 1
        %s299 = smul.addr %s298, 8
        %s300 = scalar_lea.vmem %s0, %s299
        %v301 = vld [vmem:[%s300] sm:$0xff]
        %v302 = vld [vmem:[%s1] sm:$0x1]
        %vm303 = vcmask 261120
        %v304 = vsel %vm303, %v301, 0.0
        %305 = vadd.xlane.f32.xlu0 %v304
        %v306 = vpop.xlane.xlu0 %305
        %v307 = vrcp.pop 32.0
        %v308 = vmul.f32 %v306, %v307
        %v309 = vsub.f32 %v301, %v308
        %v310 = vmul.f32 %v309, %v309
        %v311 = vsel %vm303, %v310, 0.0
        %312 = vadd.xlane.f32.xlu0 %v311
        %v313 = vpop.xlane.xlu0 %312
        %v314 = vmul.f32 %v313, %v307
        %v315 = vadd.f32 %v314, 1e-05
        %v316 = vrsqrt.pop %v315
        %v317 = vmul.f32 %v309, %v316
        %v319 = vlaneseq
        %v320 = vshrl.u32 %v319, 7
        %v321 = vsub.s32 0, %v320
        %v322 = vrot.slane %v302, %v321
        %v324 = vmul.f32 %v317, %v322
        %v325 = vld [vmem:[%s2] sm:$0xff]
        %v326 = vld [vmem:[%s2 + $0x8] sm:$0xff]
        %v327 = vld [vmem:[%s2 + $0x10] sm:$0xff]
        %v328 = vld [vmem:[%s2 + $0x18] sm:$0xff]
        %v329 = vld [vmem:[%s2 + $0x20] sm:$0xff]
        %v330 = vld [vmem:[%s2 + $0x28] sm:$0xff]
        %v331 = vld [vmem:[%s2 + $0x30] sm:$0xff]
        %v332 = vld [vmem:[%s2 + $0x38] sm:$0xff]
        %v334 = vsel %vm303, %v324, 0
        %336 = vmatprep.subr.mxu0 0.0
        %337 = vmatpush1.msra.mxu0 %v325
        %338 = vmatprep.subr.mxu0 0.0
        %339 = vmatpush1.msra.mxu0 %v326
        %340 = vmatprep.subr.mxu0 0.0
        %341 = vmatpush1.msra.mxu0 %v327
        %342 = vmatprep.subr.mxu0 0.0
        %343 = vmatpush1.msra.mxu0 %v328
        %344 = vmatprep.subr.mxu0 0.0
        %345 = vmatpush1.msra.mxu0 0.0
        %346 = vmatprep.subr.mxu0 0.0
        %347 = vmatpush1.msra.mxu0 0.0
        %348 = vmatprep.subr.mxu0 0.0
        %349 = vmatpush1.msra.mxu0 0.0
        %350 = vmatprep.subr.mxu0 0.0
        %351 = vmatpush1.msra.mxu0 0.0
        %352 = vmatprep.subr.mxu0 0.0
        %353 = vmatpush1.msra.mxu0 0.0
        %354 = vmatprep.subr.mxu0 0.0
        %355 = vmatpush1.msra.mxu0 0.0
        %356 = vmatprep.subr.mxu0 0.0
        %357 = vmatpush1.msra.mxu0 0.0
        %358 = vmatprep.subr.mxu0 0.0
        %359 = vmatpush1.msra.mxu0 0.0
        %360 = vmatprep.subr.mxu0 0.0
        %361 = vmatpush1.msra.mxu0 0.0
        %362 = vmatprep.subr.mxu0 0.0
        %363 = vmatpush1.msra.mxu0 0.0
        %364 = vmatprep.subr.mxu0 0.0
        %365 = vmatpush1.msra.mxu0 0.0
        %366 = vmatprep.subr.mxu0 0.0
        %367 = vmatpush1.msra.mxu0 0.0
        %368 = vmatprep.subr.mxu0 0.0
        %369 = vmatpush1.msra.mxu0 0.0
        %370 = vmatprep.subr.mxu0 0.0
        %371 = vmatpush1.msra.mxu0 0.0
        %372 = vmatprep.subr.mxu0 0.0
        %373 = vmatpush1.msra.mxu0 0.0
        %374 = vmatprep.subr.mxu0 0.0
        %375 = vmatpush1.msra.mxu0 0.0
        %376 = vmatprep.subr.mxu0 0.0
        %377 = vmatpush1.msra.mxu0 0.0
        %378 = vmatprep.subr.mxu0 0.0
        %379 = vmatpush1.msra.mxu0 0.0
        %380 = vmatprep.subr.mxu0 0.0
        %381 = vmatpush1.msra.mxu0 0.0
        %382 = vmatprep.subr.mxu0 0.0
        %383 = vmatpush1.msra.mxu0 0.0
        %384 = vmatprep.subr.mxu0 0.0
        %385 = vmatpush1.msra.mxu0 0.0
        %386 = vmatprep.subr.mxu0 0.0
        %387 = vmatpush1.msra.mxu0 0.0
        %388 = vmatprep.subr.mxu0 0.0
        %389 = vmatpush1.msra.mxu0 0.0
        %390 = vmatprep.subr.mxu0 0.0
        %391 = vmatpush1.msra.mxu0 0.0
        %392 = vmatprep.subr.mxu0 0.0
        %393 = vmatpush1.msra.mxu0 0.0
        %394 = vmatprep.subr.mxu0 0.0
        %395 = vmatpush1.msra.mxu0 0.0
        %396 = vmatprep.subr.mxu0 0.0
        %397 = vmatpush1.msra.mxu0 0.0
        %398 = vmatprep.subr.mxu0 0.0
        %399 = vmatpush1.msra.mxu0 0.0
        %400 = vmatprep.mubr.f32.mxu0 0.0
        %401 = vmatmul.mubr.f32.gmra.mrb[0].mxu0 %v334
        %v402 = vpop.f32.mrb[0].mxu0
        %v403 = vadd.f32 0.0, %v402
        %v404 = vpop.f32.mrb[0].mxu0
        %405 = vdwg.mxu0
        %406 = vmatprep.subr.mxu0 0.0
        %407 = vmatpush1.msra.mxu0 %v329
        %408 = vmatprep.subr.mxu0 0.0
        %409 = vmatpush1.msra.mxu0 %v330
        %410 = vmatprep.subr.mxu0 0.0
        %411 = vmatpush1.msra.mxu0 %v331
        %412 = vmatprep.subr.mxu0 0.0
        %413 = vmatpush1.msra.mxu0 %v332
        %414 = vmatprep.subr.mxu0 0.0
        %415 = vmatpush1.msra.mxu0 0.0
        %416 = vmatprep.subr.mxu0 0.0
        %417 = vmatpush1.msra.mxu0 0.0
        %418 = vmatprep.subr.mxu0 0.0
        %419 = vmatpush1.msra.mxu0 0.0
        %420 = vmatprep.subr.mxu0 0.0
        %421 = vmatpush1.msra.mxu0 0.0
        %422 = vmatprep.subr.mxu0 0.0
        %423 = vmatpush1.msra.mxu0 0.0
        %424 = vmatprep.subr.mxu0 0.0
        %425 = vmatpush1.msra.mxu0 0.0
        %426 = vmatprep.subr.mxu0 0.0
        %427 = vmatpush1.msra.mxu0 0.0
        %428 = vmatprep.subr.mxu0 0.0
        %429 = vmatpush1.msra.mxu0 0.0
        %430 = vmatprep.subr.mxu0 0.0
        %431 = vmatpush1.msra.mxu0 0.0
        %432 = vmatprep.subr.mxu0 0.0
        %433 = vmatpush1.msra.mxu0 0.0
        %434 = vmatprep.subr.mxu0 0.0
        %435 = vmatpush1.msra.mxu0 0.0
        %436 = vmatprep.subr.mxu0 0.0
        %437 = vmatpush1.msra.mxu0 0.0
        %438 = vmatprep.subr.mxu0 0.0
        %439 = vmatpush1.msra.mxu0 0.0
        %440 = vmatprep.subr.mxu0 0.0
        %441 = vmatpush1.msra.mxu0 0.0
        %442 = vmatprep.subr.mxu0 0.0
        %443 = vmatpush1.msra.mxu0 0.0
        %444 = vmatprep.subr.mxu0 0.0
        %445 = vmatpush1.msra.mxu0 0.0
        %446 = vmatprep.subr.mxu0 0.0
        %447 = vmatpush1.msra.mxu0 0.0
        %448 = vmatprep.subr.mxu0 0.0
        %449 = vmatpush1.msra.mxu0 0.0
        %450 = vmatprep.subr.mxu0 0.0
        %451 = vmatpush1.msra.mxu0 0.0
        %452 = vmatprep.subr.mxu0 0.0
        %453 = vmatpush1.msra.mxu0 0.0
        %454 = vmatprep.subr.mxu0 0.0
        %455 = vmatpush1.msra.mxu0 0.0
        %456 = vmatprep.subr.mxu0 0.0
        %457 = vmatpush1.msra.mxu0 0.0
        %458 = vmatprep.subr.mxu0 0.0
        %459 = vmatpush1.msra.mxu0 0.0
        %460 = vmatprep.subr.mxu0 0.0
        %461 = vmatpush1.msra.mxu0 0.0
        %462 = vmatprep.subr.mxu0 0.0
        %463 = vmatpush1.msra.mxu0 0.0
        %464 = vmatprep.subr.mxu0 0.0
        %465 = vmatpush1.msra.mxu0 0.0
        %466 = vmatprep.subr.mxu0 0.0
        %467 = vmatpush1.msra.mxu0 0.0
        %468 = vmatprep.subr.mxu0 0.0
        %469 = vmatpush1.msra.mxu0 0.0
        %470 = vmatprep.mubr.f32.mxu0 0.0
        %471 = vmatmul.mubr.f32.gmra.mrb[0].mxu0 %v334
        %v472 = vpop.f32.mrb[0].mxu0
        %v473 = vadd.f32 0.0, %v472
        %v474 = vpop.f32.mrb[0].mxu0
        %475 = vdwg.mxu0
        %v476 = vmul.f32 %v403, 0.25
        %v477 = vmul.f32 %v473, 0.25
        %v478 = vld [vmem:[%s3] sm:$0xff]
        %v479 = vld [vmem:[%s3 + $0x8] sm:$0xff]
        %v480 = vld [vmem:[%s3 + $0x10] sm:$0xff]
        %v481 = vld [vmem:[%s3 + $0x18] sm:$0xff]
        %v482 = vld [vmem:[%s3 + $0x20] sm:$0xff]
        %v483 = vld [vmem:[%s3 + $0x28] sm:$0xff]
        %v484 = vld [vmem:[%s3 + $0x30] sm:$0xff]
        %v485 = vld [vmem:[%s3 + $0x38] sm:$0xff]
        %486 = vmatprep.subr.mxu0 0.0
        %487 = vmatpush1.msra.mxu0 %v478
        %488 = vmatprep.subr.mxu0 0.0
        %489 = vmatpush1.msra.mxu0 %v479
        %490 = vmatprep.subr.mxu0 0.0
        %491 = vmatpush1.msra.mxu0 %v480
        %492 = vmatprep.subr.mxu0 0.0
        %493 = vmatpush1.msra.mxu0 %v481
        %494 = vmatprep.subr.mxu0 0.0
        %495 = vmatpush1.msra.mxu0 0.0
        %496 = vmatprep.subr.mxu0 0.0
        %497 = vmatpush1.msra.mxu0 0.0
        %498 = vmatprep.subr.mxu0 0.0
        %499 = vmatpush1.msra.mxu0 0.0
        %500 = vmatprep.subr.mxu0 0.0
        %501 = vmatpush1.msra.mxu0 0.0
        %502 = vmatprep.subr.mxu0 0.0
        %503 = vmatpush1.msra.mxu0 0.0
        %504 = vmatprep.subr.mxu0 0.0
        %505 = vmatpush1.msra.mxu0 0.0
        %506 = vmatprep.subr.mxu0 0.0
        %507 = vmatpush1.msra.mxu0 0.0
        %508 = vmatprep.subr.mxu0 0.0
        %509 = vmatpush1.msra.mxu0 0.0
        %510 = vmatprep.subr.mxu0 0.0
        %511 = vmatpush1.msra.mxu0 0.0
        %512 = vmatprep.subr.mxu0 0.0
        %513 = vmatpush1.msra.mxu0 0.0
        %514 = vmatprep.subr.mxu0 0.0
        %515 = vmatpush1.msra.mxu0 0.0
        %516 = vmatprep.subr.mxu0 0.0
        %517 = vmatpush1.msra.mxu0 0.0
        %518 = vmatprep.subr.mxu0 0.0
        %519 = vmatpush1.msra.mxu0 0.0
        %520 = vmatprep.subr.mxu0 0.0
        %521 = vmatpush1.msra.mxu0 0.0
        %522 = vmatprep.subr.mxu0 0.0
        %523 = vmatpush1.msra.mxu0 0.0
        %524 = vmatprep.subr.mxu0 0.0
        %525 = vmatpush1.msra.mxu0 0.0
        %526 = vmatprep.subr.mxu0 0.0
        %527 = vmatpush1.msra.mxu0 0.0
        %528 = vmatprep.subr.mxu0 0.0
        %529 = vmatpush1.msra.mxu0 0.0
        %530 = vmatprep.subr.mxu0 0.0
        %531 = vmatpush1.msra.mxu0 0.0
        %532 = vmatprep.subr.mxu0 0.0
        %533 = vmatpush1.msra.mxu0 0.0
        %534 = vmatprep.subr.mxu0 0.0
        %535 = vmatpush1.msra.mxu0 0.0
        %536 = vmatprep.subr.mxu0 0.0
        %537 = vmatpush1.msra.mxu0 0.0
        %538 = vmatprep.subr.mxu0 0.0
        %539 = vmatpush1.msra.mxu0 0.0
        %540 = vmatprep.subr.mxu0 0.0
        %541 = vmatpush1.msra.mxu0 0.0
        %542 = vmatprep.subr.mxu0 0.0
        %543 = vmatpush1.msra.mxu0 0.0
        %544 = vmatprep.subr.mxu0 0.0
        %545 = vmatpush1.msra.mxu0 0.0
        %546 = vmatprep.subr.mxu0 0.0
        %547 = vmatpush1.msra.mxu0 0.0
        %548 = vmatprep.subr.mxu0 0.0
        %549 = vmatpush1.msra.mxu0 0.0
        %550 = vmatprep.mubr.f32.mxu0 0.0
        %551 = vmatmul.mubr.f32.gmra.mrb[0].mxu0 %v334
        %v552 = vpop.f32.mrb[0].mxu0
        %v553 = vadd.f32 0.0, %v552
        %v554 = vpop.f32.mrb[0].mxu0
        %555 = vdwg.mxu0
        %556 = vmatprep.subr.mxu0 0.0
        %557 = vmatpush1.msra.mxu0 %v482
        %558 = vmatprep.subr.mxu0 0.0
        %559 = vmatpush1.msra.mxu0 %v483
        %560 = vmatprep.subr.mxu0 0.0
        %561 = vmatpush1.msra.mxu0 %v484
        %562 = vmatprep.subr.mxu0 0.0
        %563 = vmatpush1.msra.mxu0 %v485
        %564 = vmatprep.subr.mxu0 0.0
        %565 = vmatpush1.msra.mxu0 0.0
        %566 = vmatprep.subr.mxu0 0.0
        %567 = vmatpush1.msra.mxu0 0.0
        %568 = vmatprep.subr.mxu0 0.0
        %569 = vmatpush1.msra.mxu0 0.0
        %570 = vmatprep.subr.mxu0 0.0
        %571 = vmatpush1.msra.mxu0 0.0
        %572 = vmatprep.subr.mxu0 0.0
        %573 = vmatpush1.msra.mxu0 0.0
        %574 = vmatprep.subr.mxu0 0.0
        %575 = vmatpush1.msra.mxu0 0.0
        %576 = vmatprep.subr.mxu0 0.0
        %577 = vmatpush1.msra.mxu0 0.0
        %578 = vmatprep.subr.mxu0 0.0
        %579 = vmatpush1.msra.mxu0 0.0
        %580 = vmatprep.subr.mxu0 0.0
        %581 = vmatpush1.msra.mxu0 0.0
        %582 = vmatprep.subr.mxu0 0.0
        %583 = vmatpush1.msra.mxu0 0.0
        %584 = vmatprep.subr.mxu0 0.0
        %585 = vmatpush1.msra.mxu0 0.0
        %586 = vmatprep.subr.mxu0 0.0
        %587 = vmatpush1.msra.mxu0 0.0
        %588 = vmatprep.subr.mxu0 0.0
        %589 = vmatpush1.msra.mxu0 0.0
        %590 = vmatprep.subr.mxu0 0.0
        %591 = vmatpush1.msra.mxu0 0.0
        %592 = vmatprep.subr.mxu0 0.0
        %593 = vmatpush1.msra.mxu0 0.0
        %594 = vmatprep.subr.mxu0 0.0
        %595 = vmatpush1.msra.mxu0 0.0
        %596 = vmatprep.subr.mxu0 0.0
        %597 = vmatpush1.msra.mxu0 0.0
        %598 = vmatprep.subr.mxu0 0.0
        %599 = vmatpush1.msra.mxu0 0.0
        %600 = vmatprep.subr.mxu0 0.0
        %601 = vmatpush1.msra.mxu0 0.0
        %602 = vmatprep.subr.mxu0 0.0
        %603 = vmatpush1.msra.mxu0 0.0
        %604 = vmatprep.subr.mxu0 0.0
        %605 = vmatpush1.msra.mxu0 0.0
        %606 = vmatprep.subr.mxu0 0.0
        %607 = vmatpush1.msra.mxu0 0.0
        %608 = vmatprep.subr.mxu0 0.0
        %609 = vmatpush1.msra.mxu0 0.0
        %610 = vmatprep.subr.mxu0 0.0
        %611 = vmatpush1.msra.mxu0 0.0
        %612 = vmatprep.subr.mxu0 0.0
        %613 = vmatpush1.msra.mxu0 0.0
        %614 = vmatprep.subr.mxu0 0.0
        %615 = vmatpush1.msra.mxu0 0.0
        %616 = vmatprep.subr.mxu0 0.0
        %617 = vmatpush1.msra.mxu0 0.0
        %618 = vmatprep.subr.mxu0 0.0
        %619 = vmatpush1.msra.mxu0 0.0
        %620 = vmatprep.mubr.f32.mxu0 0.0
        %621 = vmatmul.mubr.f32.gmra.mrb[0].mxu0 %v334
        %v622 = vpop.f32.mrb[0].mxu0
        %v623 = vadd.f32 0.0, %v622
        %v624 = vpop.f32.mrb[0].mxu0
        %625 = vdwg.mxu0
        %v626 = vld [vmem:[%s4] sm:$0xff]
        %v627 = vld [vmem:[%s4 + $0x8] sm:$0xff]
        %v628 = vld [vmem:[%s4 + $0x10] sm:$0xff]
        %v629 = vld [vmem:[%s4 + $0x18] sm:$0xff]
        %v630 = vld [vmem:[%s4 + $0x20] sm:$0xff]
        %v631 = vld [vmem:[%s4 + $0x28] sm:$0xff]
        %v632 = vld [vmem:[%s4 + $0x30] sm:$0xff]
        %v633 = vld [vmem:[%s4 + $0x38] sm:$0xff]
        %634 = vmatprep.subr.mxu0 0.0
        %635 = vmatpush1.msra.mxu0 %v626
        %636 = vmatprep.subr.mxu0 0.0
        %637 = vmatpush1.msra.mxu0 %v627
        %638 = vmatprep.subr.mxu0 0.0
        %639 = vmatpush1.msra.mxu0 %v628
        %640 = vmatprep.subr.mxu0 0.0
        %641 = vmatpush1.msra.mxu0 %v629
        %642 = vmatprep.subr.mxu0 0.0
        %643 = vmatpush1.msra.mxu0 0.0
        %644 = vmatprep.subr.mxu0 0.0
        %645 = vmatpush1.msra.mxu0 0.0
        %646 = vmatprep.subr.mxu0 0.0
        %647 = vmatpush1.msra.mxu0 0.0
        %648 = vmatprep.subr.mxu0 0.0
        %649 = vmatpush1.msra.mxu0 0.0
        %650 = vmatprep.subr.mxu0 0.0
        %651 = vmatpush1.msra.mxu0 0.0
        %652 = vmatprep.subr.mxu0 0.0
        %653 = vmatpush1.msra.mxu0 0.0
        %654 = vmatprep.subr.mxu0 0.0
        %655 = vmatpush1.msra.mxu0 0.0
        %656 = vmatprep.subr.mxu0 0.0
        %657 = vmatpush1.msra.mxu0 0.0
        %658 = vmatprep.subr.mxu0 0.0
        %659 = vmatpush1.msra.mxu0 0.0
        %660 = vmatprep.subr.mxu0 0.0
        %661 = vmatpush1.msra.mxu0 0.0
        %662 = vmatprep.subr.mxu0 0.0
        %663 = vmatpush1.msra.mxu0 0.0
        %664 = vmatprep.subr.mxu0 0.0
        %665 = vmatpush1.msra.mxu0 0.0
        %666 = vmatprep.subr.mxu0 0.0
        %667 = vmatpush1.msra.mxu0 0.0
        %668 = vmatprep.subr.mxu0 0.0
        %669 = vmatpush1.msra.mxu0 0.0
        %670 = vmatprep.subr.mxu0 0.0
        %671 = vmatpush1.msra.mxu0 0.0
        %672 = vmatprep.subr.mxu0 0.0
        %673 = vmatpush1.msra.mxu0 0.0
        %674 = vmatprep.subr.mxu0 0.0
        %675 = vmatpush1.msra.mxu0 0.0
        %676 = vmatprep.subr.mxu0 0.0
        %677 = vmatpush1.msra.mxu0 0.0
        %678 = vmatprep.subr.mxu0 0.0
        %679 = vmatpush1.msra.mxu0 0.0
        %680 = vmatprep.subr.mxu0 0.0
        %681 = vmatpush1.msra.mxu0 0.0
        %682 = vmatprep.subr.mxu0 0.0
        %683 = vmatpush1.msra.mxu0 0.0
        %684 = vmatprep.subr.mxu0 0.0
        %685 = vmatpush1.msra.mxu0 0.0
        %686 = vmatprep.subr.mxu0 0.0
        %687 = vmatpush1.msra.mxu0 0.0
        %688 = vmatprep.subr.mxu0 0.0
        %689 = vmatpush1.msra.mxu0 0.0
        %690 = vmatprep.subr.mxu0 0.0
        %691 = vmatpush1.msra.mxu0 0.0
        %692 = vmatprep.subr.mxu0 0.0
        %693 = vmatpush1.msra.mxu0 0.0
        %694 = vmatprep.subr.mxu0 0.0
        %695 = vmatpush1.msra.mxu0 0.0
        %696 = vmatprep.subr.mxu0 0.0
        %697 = vmatpush1.msra.mxu0 0.0
        %698 = vmatprep.mubr.f32.mxu0 0.0
        %699 = vmatmul.mubr.f32.gmra.mrb[0].mxu0 %v334
        %v700 = vpop.f32.mrb[0].mxu0
        %v701 = vadd.f32 0.0, %v700
        %v702 = vpop.f32.mrb[0].mxu0
        %703 = vdwg.mxu0
        %704 = vmatprep.subr.mxu0 0.0
        %705 = vmatpush1.msra.mxu0 %v630
        %706 = vmatprep.subr.mxu0 0.0
        %707 = vmatpush1.msra.mxu0 %v631
        %708 = vmatprep.subr.mxu0 0.0
        %709 = vmatpush1.msra.mxu0 %v632
        %710 = vmatprep.subr.mxu0 0.0
        %711 = vmatpush1.msra.mxu0 %v633
        %712 = vmatprep.subr.mxu0 0.0
        %713 = vmatpush1.msra.mxu0 0.0
        %714 = vmatprep.subr.mxu0 0.0
        %715 = vmatpush1.msra.mxu0 0.0
        %716 = vmatprep.subr.mxu0 0.0
        %717 = vmatpush1.msra.mxu0 0.0
        %718 = vmatprep.subr.mxu0 0.0
        %719 = vmatpush1.msra.mxu0 0.0
        %720 = vmatprep.subr.mxu0 0.0
        %721 = vmatpush1.msra.mxu0 0.0
        %722 = vmatprep.subr.mxu0 0.0
        %723 = vmatpush1.msra.mxu0 0.0
        %724 = vmatprep.subr.mxu0 0.0
        %725 = vmatpush1.msra.mxu0 0.0
        %726 = vmatprep.subr.mxu0 0.0
        %727 = vmatpush1.msra.mxu0 0.0
        %728 = vmatprep.subr.mxu0 0.0
        %729 = vmatpush1.msra.mxu0 0.0
        %730 = vmatprep.subr.mxu0 0.0
        %731 = vmatpush1.msra.mxu0 0.0
        %732 = vmatprep.subr.mxu0 0.0
        %733 = vmatpush1.msra.mxu0 0.0
        %734 = vmatprep.subr.mxu0 0.0
        %735 = vmatpush1.msra.mxu0 0.0
        %736 = vmatprep.subr.mxu0 0.0
        %737 = vmatpush1.msra.mxu0 0.0
        %738 = vmatprep.subr.mxu0 0.0
        %739 = vmatpush1.msra.mxu0 0.0
        %740 = vmatprep.subr.mxu0 0.0
        %741 = vmatpush1.msra.mxu0 0.0
        %742 = vmatprep.subr.mxu0 0.0
        %743 = vmatpush1.msra.mxu0 0.0
        %744 = vmatprep.subr.mxu0 0.0
        %745 = vmatpush1.msra.mxu0 0.0
        %746 = vmatprep.subr.mxu0 0.0
        %747 = vmatpush1.msra.mxu0 0.0
        %748 = vmatprep.subr.mxu0 0.0
        %749 = vmatpush1.msra.mxu0 0.0
        %750 = vmatprep.subr.mxu0 0.0
        %751 = vmatpush1.msra.mxu0 0.0
        %752 = vmatprep.subr.mxu0 0.0
        %753 = vmatpush1.msra.mxu0 0.0
        %754 = vmatprep.subr.mxu0 0.0
        %755 = vmatpush1.msra.mxu0 0.0
        %756 = vmatprep.subr.mxu0 0.0
        %757 = vmatpush1.msra.mxu0 0.0
        %758 = vmatprep.subr.mxu0 0.0
        %759 = vmatpush1.msra.mxu0 0.0
        %760 = vmatprep.subr.mxu0 0.0
        %761 = vmatpush1.msra.mxu0 0.0
        %762 = vmatprep.subr.mxu0 0.0
        %763 = vmatpush1.msra.mxu0 0.0
        %764 = vmatprep.subr.mxu0 0.0
        %765 = vmatpush1.msra.mxu0 0.0
        %766 = vmatprep.subr.mxu0 0.0
        %767 = vmatpush1.msra.mxu0 0.0
        %768 = vmatprep.mubr.f32.mxu0 0.0
        %769 = vmatmul.mubr.f32.gmra.mrb[0].mxu0 %v334
        %v770 = vpop.f32.mrb[0].mxu0
        %v771 = vadd.f32 0.0, %v770
        %v772 = vpop.f32.mrb[0].mxu0
        %773 = vdwg.mxu0
        %v774 = vld [vmem:[%s6] sm:$0x3]
        %v775 = vld [vmem:[%s7] sm:$0x3]
        %vm776 = vcmask 130048
        %v778 = vsel %vm776, %v476, 0
        %v781 = vsel %vm776, %v553, 0
        %783 = vmatprep.subr.mxu0 0.0
        %784 = vmatpush1.xpose.msra.mxu0 %v781
        %785 = vmatprep.subr.mxu0 0.0
        %786 = vmatpush1.xpose.msra.mxu0 0.0
        %787 = vmatprep.subr.mxu0 0.0
        %788 = vmatpush1.xpose.msra.mxu0 0.0
        %789 = vmatprep.subr.mxu0 0.0
        %790 = vmatpush1.xpose.msra.mxu0 0.0
        %791 = vmatprep.subr.mxu0 0.0
        %792 = vmatpush1.xpose.msra.mxu0 0.0
        %793 = vmatprep.subr.mxu0 0.0
        %794 = vmatpush1.xpose.msra.mxu0 0.0
        %795 = vmatprep.subr.mxu0 0.0
        %796 = vmatpush1.xpose.msra.mxu0 0.0
        %797 = vmatprep.subr.mxu0 0.0
        %798 = vmatpush1.xpose.msra.mxu0 0.0
        %799 = vmatprep.subr.mxu0 0.0
        %800 = vmatpush1.xpose.msra.mxu0 0.0
        %801 = vmatprep.subr.mxu0 0.0
        %802 = vmatpush1.xpose.msra.mxu0 0.0
        %803 = vmatprep.subr.mxu0 0.0
        %804 = vmatpush1.xpose.msra.mxu0 0.0
        %805 = vmatprep.subr.mxu0 0.0
        %806 = vmatpush1.xpose.msra.mxu0 0.0
        %807 = vmatprep.subr.mxu0 0.0
        %808 = vmatpush1.xpose.msra.mxu0 0.0
        %809 = vmatprep.subr.mxu0 0.0
        %810 = vmatpush1.xpose.msra.mxu0 0.0
        %811 = vmatprep.subr.mxu0 0.0
        %812 = vmatpush1.xpose.msra.mxu0 0.0
        %813 = vmatprep.subr.mxu0 0.0
        %814 = vmatpush1.xpose.msra.mxu0 0.0
        %815 = vmatprep.subr.mxu0 0.0
        %816 = vmatpush1.xpose.msra.mxu0 0.0
        %817 = vmatprep.subr.mxu0 0.0
        %818 = vmatpush1.xpose.msra.mxu0 0.0
        %819 = vmatprep.subr.mxu0 0.0
        %820 = vmatpush1.xpose.msra.mxu0 0.0
        %821 = vmatprep.subr.mxu0 0.0
        %822 = vmatpush1.xpose.msra.mxu0 0.0
        %823 = vmatprep.subr.mxu0 0.0
        %824 = vmatpush1.xpose.msra.mxu0 0.0
        %825 = vmatprep.subr.mxu0 0.0
        %826 = vmatpush1.xpose.msra.mxu0 0.0
        %827 = vmatprep.subr.mxu0 0.0
        %828 = vmatpush1.xpose.msra.mxu0 0.0
        %829 = vmatprep.subr.mxu0 0.0
        %830 = vmatpush1.xpose.msra.mxu0 0.0
        %831 = vmatprep.subr.mxu0 0.0
        %832 = vmatpush1.xpose.msra.mxu0 0.0
        %833 = vmatprep.subr.mxu0 0.0
        %834 = vmatpush1.xpose.msra.mxu0 0.0
        %835 = vmatprep.subr.mxu0 0.0
        %836 = vmatpush1.xpose.msra.mxu0 0.0
        %837 = vmatprep.subr.mxu0 0.0
        %838 = vmatpush1.xpose.msra.mxu0 0.0
        %839 = vmatprep.subr.mxu0 0.0
        %840 = vmatpush1.xpose.msra.mxu0 0.0
        %841 = vmatprep.subr.mxu0 0.0
        %842 = vmatpush1.xpose.msra.mxu0 0.0
        %843 = vmatprep.subr.mxu0 0.0
        %844 = vmatpush1.xpose.msra.mxu0 0.0
        %845 = vmatprep.subr.mxu0 0.0
        %846 = vmatpush1.xpose.msra.mxu0 0.0
        %847 = vmatprep.mubr.f32.mxu0 0.0
        %848 = vmatmul.mubr.f32.gmra.mrb[0].mxu0 %v778
        %v849 = vpop.f32.mrb[0].mxu0
        %v850 = vadd.f32 0.0, %v849
        %v851 = vpop.f32.mrb[0].mxu0
        %852 = vdwg.mxu0
        %v854 = vsel %vm776, %v477, 0
        %v857 = vsel %vm776, %v623, 0
        %859 = vmatprep.subr.mxu0 0.0
        %860 = vmatpush1.xpose.msra.mxu0 %v857
        %861 = vmatprep.subr.mxu0 0.0
        %862 = vmatpush1.xpose.msra.mxu0 0.0
        %863 = vmatprep.subr.mxu0 0.0
        %864 = vmatpush1.xpose.msra.mxu0 0.0
        %865 = vmatprep.subr.mxu0 0.0
        %866 = vmatpush1.xpose.msra.mxu0 0.0
        %867 = vmatprep.subr.mxu0 0.0
        %868 = vmatpush1.xpose.msra.mxu0 0.0
        %869 = vmatprep.subr.mxu0 0.0
        %870 = vmatpush1.xpose.msra.mxu0 0.0
        %871 = vmatprep.subr.mxu0 0.0
        %872 = vmatpush1.xpose.msra.mxu0 0.0
        %873 = vmatprep.subr.mxu0 0.0
        %874 = vmatpush1.xpose.msra.mxu0 0.0
        %875 = vmatprep.subr.mxu0 0.0
        %876 = vmatpush1.xpose.msra.mxu0 0.0
        %877 = vmatprep.subr.mxu0 0.0
        %878 = vmatpush1.xpose.msra.mxu0 0.0
        %879 = vmatprep.subr.mxu0 0.0
        %880 = vmatpush1.xpose.msra.mxu0 0.0
        %881 = vmatprep.subr.mxu0 0.0
        %882 = vmatpush1.xpose.msra.mxu0 0.0
        %883 = vmatprep.subr.mxu0 0.0
        %884 = vmatpush1.xpose.msra.mxu0 0.0
        %885 = vmatprep.subr.mxu0 0.0
        %886 = vmatpush1.xpose.msra.mxu0 0.0
        %887 = vmatprep.subr.mxu0 0.0
        %888 = vmatpush1.xpose.msra.mxu0 0.0
        %889 = vmatprep.subr.mxu0 0.0
        %890 = vmatpush1.xpose.msra.mxu0 0.0
        %891 = vmatprep.subr.mxu0 0.0
        %892 = vmatpush1.xpose.msra.mxu0 0.0
        %893 = vmatprep.subr.mxu0 0.0
        %894 = vmatpush1.xpose.msra.mxu0 0.0
        %895 = vmatprep.subr.mxu0 0.0
        %896 = vmatpush1.xpose.msra.mxu0 0.0
        %897 = vmatprep.subr.mxu0 0.0
        %898 = vmatpush1.xpose.msra.mxu0 0.0
        %899 = vmatprep.subr.mxu0 0.0
        %900 = vmatpush1.xpose.msra.mxu0 0.0
        %901 = vmatprep.subr.mxu0 0.0
        %902 = vmatpush1.xpose.msra.mxu0 0.0
        %903 = vmatprep.subr.mxu0 0.0
        %904 = vmatpush1.xpose.msra.mxu0 0.0
        %905 = vmatprep.subr.mxu0 0.0
        %906 = vmatpush1.xpose.msra.mxu0 0.0
        %907 = vmatprep.subr.mxu0 0.0
        %908 = vmatpush1.xpose.msra.mxu0 0.0
        %909 = vmatprep.subr.mxu0 0.0
        %910 = vmatpush1.xpose.msra.mxu0 0.0
        %911 = vmatprep.subr.mxu0 0.0
        %912 = vmatpush1.xpose.msra.mxu0 0.0
        %913 = vmatprep.subr.mxu0 0.0
        %914 = vmatpush1.xpose.msra.mxu0 0.0
        %915 = vmatprep.subr.mxu0 0.0
        %916 = vmatpush1.xpose.msra.mxu0 0.0
        %917 = vmatprep.subr.mxu0 0.0
        %918 = vmatpush1.xpose.msra.mxu0 0.0
        %919 = vmatprep.subr.mxu0 0.0
        %920 = vmatpush1.xpose.msra.mxu0 0.0
        %921 = vmatprep.subr.mxu0 0.0
        %922 = vmatpush1.xpose.msra.mxu0 0.0
        %923 = vmatprep.mubr.f32.mxu0 0.0
        %924 = vmatmul.mubr.f32.gmra.mrb[0].mxu0 %v854
        %v925 = vpop.f32.mrb[0].mxu0
        %v926 = vadd.f32 0.0, %v925
        %v927 = vpop.f32.mrb[0].mxu0
        %928 = vdwg.mxu0
        %v931 = vunpack.c.l.s4 1966171168
        %v932 = vunpack.c.0.s8 %v931
        %v933 = vlaneseq
        %v934 = vshrl.u32 %v933, 7
        %v935 = vsub.s32 %v932, %v934
        %v936 = vrot.slane %v774, %v935
        %v937 = vcombine.high %v936, %v936
        %v939 = vunpack.c.l.s4 1966171168
        %v940 = vunpack.c.0.s8 %v939
        %v941 = vlaneseq
        %v942 = vshrl.u32 %v941, 7
        %v943 = vsub.s32 %v940, %v942
        %v944 = vrot.slane %v936, %v943
        %v946 = vunpack.c.l.s4 1966171168
        %v947 = vunpack.c.0.s8 %v946
        %v948 = vlaneseq
        %v949 = vshrl.u32 %v948, 7
        %v950 = vsub.s32 %v947, %v949
        %v951 = vrot.slane %v937, %v950
        %v952 = vlaneseq
        %v953 = vshrl.u32 %v952, 7
        %v954 = vsub.s32 0, %v953
        %v955 = vrot.slane %v944, %v954
        %v956 = vlaneseq
        %v957 = vshrl.u32 %v956, 7
        %v958 = vsub.s32 0, %v957
        %v959 = vrot.slane %v951, %v958
        %v962 = vmul.f32 %v476, %v955
        %v963 = vmul.f32 %v477, %v959
        %v964 = vsel %vm776, %v962, 0.0
        %965 = vadd.xlane.f32.xlu0 %v964
        %v966 = vpop.xlane.xlu0 %965
        %v967 = vsel %vm776, %v963, 0.0
        %968 = vadd.xlane.f32.xlu0 %v967
        %v969 = vpop.xlane.xlu0 %968
        %vm970 = vcmask 64512
        %v971 = vsel %vm970, %v850, -inf
        %972 = vmax.xlane.f32.xlu0 %v971
        %v973 = vpop.xlane.xlu0 %972
        %v974 = vsel %vm970, %v926, -inf
        %975 = vmax.xlane.f32.xlu0 %v974
        %v976 = vpop.xlane.xlu0 %975
        %v977 = vmax.f32 %v973, %v966
        %v978 = vmax.f32 %v976, %v969
        %v979 = vsub.f32 %v850, %v977
        %v980 = vsub.f32 %v926, %v978
        %v981 = vmul.f32 %v979, 1.442695
        %v982 = vpow.pop %v981
        %v983 = vmul.f32 %v980, 1.442695
        %v984 = vpow.pop %v983
        %v985 = vsub.f32 %v966, %v977
        %v986 = vsub.f32 %v969, %v978
        %v987 = vmul.f32 %v985, 1.442695
        %v988 = vpow.pop %v987
        %v989 = vmul.f32 %v986, 1.442695
        %v990 = vpow.pop %v989
        %v991 = vsel %vm970, %v982, 0.0
        %992 = vadd.xlane.f32.xlu0 %v991
        %v993 = vpop.xlane.xlu0 %992
        %v994 = vsel %vm970, %v984, 0.0
        %995 = vadd.xlane.f32.xlu0 %v994
        %v996 = vpop.xlane.xlu0 %995
        %v997 = vadd.f32 %v993, %v988
        %v998 = vadd.f32 %v996, %v990
        %v1001 = vunpack.c.l.s4 1966171168
        %v1002 = vunpack.c.0.s8 %v1001
        %v1003 = vlaneseq
        %v1004 = vshrl.u32 %v1003, 7
        %v1005 = vsub.s32 %v1002, %v1004
        %v1006 = vrot.slane %v775, %v1005
        %v1007 = vcombine.high %v1006, %v1006
        %v1009 = vunpack.c.l.s4 1966171168
        %v1010 = vunpack.c.0.s8 %v1009
        %v1011 = vlaneseq
        %v1012 = vshrl.u32 %v1011, 7
        %v1013 = vsub.s32 %v1010, %v1012
        %v1014 = vrot.slane %v1006, %v1013
        %v1016 = vunpack.c.l.s4 1966171168
        %v1017 = vunpack.c.0.s8 %v1016
        %v1018 = vlaneseq
        %v1019 = vshrl.u32 %v1018, 7
        %v1020 = vsub.s32 %v1017, %v1019
        %v1021 = vrot.slane %v1007, %v1020
        %v1022 = vlaneseq
        %v1023 = vshrl.u32 %v1022, 7
        %v1024 = vsub.s32 0, %v1023
        %v1025 = vrot.slane %v1014, %v1024
        %v1026 = vlaneseq
        %v1027 = vshrl.u32 %v1026, 7
        %v1028 = vsub.s32 0, %v1027
        %v1029 = vrot.slane %v1021, %v1028
        %v1032 = vmul.f32 %v988, %v1025
        %v1033 = vmul.f32 %v990, %v1029
        %v1035 = vsel %vm970, %v982, 0
        %1037 = vmatprep.subr.mxu0 0.0
        %1038 = vmatpush1.msra.mxu0 %v701
        %1039 = vmatprep.subr.mxu0 0.0
        %1040 = vmatpush1.msra.mxu0 0.0
        %1041 = vmatprep.subr.mxu0 0.0
        %1042 = vmatpush1.msra.mxu0 0.0
        %1043 = vmatprep.subr.mxu0 0.0
        %1044 = vmatpush1.msra.mxu0 0.0
        %1045 = vmatprep.subr.mxu0 0.0
        %1046 = vmatpush1.msra.mxu0 0.0
        %1047 = vmatprep.subr.mxu0 0.0
        %1048 = vmatpush1.msra.mxu0 0.0
        %1049 = vmatprep.subr.mxu0 0.0
        %1050 = vmatpush1.msra.mxu0 0.0
        %1051 = vmatprep.subr.mxu0 0.0
        %1052 = vmatpush1.msra.mxu0 0.0
        %1053 = vmatprep.subr.mxu0 0.0
        %1054 = vmatpush1.msra.mxu0 0.0
        %1055 = vmatprep.subr.mxu0 0.0
        %1056 = vmatpush1.msra.mxu0 0.0
        %1057 = vmatprep.subr.mxu0 0.0
        %1058 = vmatpush1.msra.mxu0 0.0
        %1059 = vmatprep.subr.mxu0 0.0
        %1060 = vmatpush1.msra.mxu0 0.0
        %1061 = vmatprep.subr.mxu0 0.0
        %1062 = vmatpush1.msra.mxu0 0.0
        %1063 = vmatprep.subr.mxu0 0.0
        %1064 = vmatpush1.msra.mxu0 0.0
        %1065 = vmatprep.subr.mxu0 0.0
        %1066 = vmatpush1.msra.mxu0 0.0
        %1067 = vmatprep.subr.mxu0 0.0
        %1068 = vmatpush1.msra.mxu0 0.0
        %1069 = vmatprep.subr.mxu0 0.0
        %1070 = vmatpush1.msra.mxu0 0.0
        %1071 = vmatprep.subr.mxu0 0.0
        %1072 = vmatpush1.msra.mxu0 0.0
        %1073 = vmatprep.subr.mxu0 0.0
        %1074 = vmatpush1.msra.mxu0 0.0
        %1075 = vmatprep.subr.mxu0 0.0
        %1076 = vmatpush1.msra.mxu0 0.0
        %1077 = vmatprep.subr.mxu0 0.0
        %1078 = vmatpush1.msra.mxu0 0.0
        %1079 = vmatprep.subr.mxu0 0.0
        %1080 = vmatpush1.msra.mxu0 0.0
        %1081 = vmatprep.subr.mxu0 0.0
        %1082 = vmatpush1.msra.mxu0 0.0
        %1083 = vmatprep.subr.mxu0 0.0
        %1084 = vmatpush1.msra.mxu0 0.0
        %1085 = vmatprep.subr.mxu0 0.0
        %1086 = vmatpush1.msra.mxu0 0.0
        %1087 = vmatprep.subr.mxu0 0.0
        %1088 = vmatpush1.msra.mxu0 0.0
        %1089 = vmatprep.subr.mxu0 0.0
        %1090 = vmatpush1.msra.mxu0 0.0
        %1091 = vmatprep.subr.mxu0 0.0
        %1092 = vmatpush1.msra.mxu0 0.0
        %1093 = vmatprep.subr.mxu0 0.0
        %1094 = vmatpush1.msra.mxu0 0.0
        %1095 = vmatprep.subr.mxu0 0.0
        %1096 = vmatpush1.msra.mxu0 0.0
        %1097 = vmatprep.subr.mxu0 0.0
        %1098 = vmatpush1.msra.mxu0 0.0
        %1099 = vmatprep.subr.mxu0 0.0
        %1100 = vmatpush1.msra.mxu0 0.0
        %1101 = vmatprep.mubr.f32.mxu0 0.0
        %1102 = vmatmul.mubr.f32.gmra.mrb[0].mxu0 %v1035
        %v1103 = vpop.f32.mrb[0].mxu0
        %v1104 = vadd.f32 %v1032, %v1103
        %v1105 = vpop.f32.mrb[0].mxu0
        %1106 = vdwg.mxu0
        %v1108 = vsel %vm970, %v984, 0
        %1110 = vmatprep.subr.mxu0 0.0
        %1111 = vmatpush1.msra.mxu0 %v771
        %1112 = vmatprep.subr.mxu0 0.0
        %1113 = vmatpush1.msra.mxu0 0.0
        %1114 = vmatprep.subr.mxu0 0.0
        %1115 = vmatpush1.msra.mxu0 0.0
        %1116 = vmatprep.subr.mxu0 0.0
        %1117 = vmatpush1.msra.mxu0 0.0
        %1118 = vmatprep.subr.mxu0 0.0
        %1119 = vmatpush1.msra.mxu0 0.0
        %1120 = vmatprep.subr.mxu0 0.0
        %1121 = vmatpush1.msra.mxu0 0.0
        %1122 = vmatprep.subr.mxu0 0.0
        %1123 = vmatpush1.msra.mxu0 0.0
        %1124 = vmatprep.subr.mxu0 0.0
        %1125 = vmatpush1.msra.mxu0 0.0
        %1126 = vmatprep.subr.mxu0 0.0
        %1127 = vmatpush1.msra.mxu0 0.0
        %1128 = vmatprep.subr.mxu0 0.0
        %1129 = vmatpush1.msra.mxu0 0.0
        %1130 = vmatprep.subr.mxu0 0.0
        %1131 = vmatpush1.msra.mxu0 0.0
        %1132 = vmatprep.subr.mxu0 0.0
        %1133 = vmatpush1.msra.mxu0 0.0
        %1134 = vmatprep.subr.mxu0 0.0
        %1135 = vmatpush1.msra.mxu0 0.0
        %1136 = vmatprep.subr.mxu0 0.0
        %1137 = vmatpush1.msra.mxu0 0.0
        %1138 = vmatprep.subr.mxu0 0.0
        %1139 = vmatpush1.msra.mxu0 0.0
        %1140 = vmatprep.subr.mxu0 0.0
        %1141 = vmatpush1.msra.mxu0 0.0
        %1142 = vmatprep.subr.mxu0 0.0
        %1143 = vmatpush1.msra.mxu0 0.0
        %1144 = vmatprep.subr.mxu0 0.0
        %1145 = vmatpush1.msra.mxu0 0.0
        %1146 = vmatprep.subr.mxu0 0.0
        %1147 = vmatpush1.msra.mxu0 0.0
        %1148 = vmatprep.subr.mxu0 0.0
        %1149 = vmatpush1.msra.mxu0 0.0
        %1150 = vmatprep.subr.mxu0 0.0
        %1151 = vmatpush1.msra.mxu0 0.0
        %1152 = vmatprep.subr.mxu0 0.0
        %1153 = vmatpush1.msra.mxu0 0.0
        %1154 = vmatprep.subr.mxu0 0.0
        %1155 = vmatpush1.msra.mxu0 0.0
        %1156 = vmatprep.subr.mxu0 0.0
        %1157 = vmatpush1.msra.mxu0 0.0
        %1158 = vmatprep.subr.mxu0 0.0
        %1159 = vmatpush1.msra.mxu0 0.0
        %1160 = vmatprep.subr.mxu0 0.0
        %1161 = vmatpush1.msra.mxu0 0.0
        %1162 = vmatprep.subr.mxu0 0.0
        %1163 = vmatpush1.msra.mxu0 0.0
        %1164 = vmatprep.subr.mxu0 0.0
        %1165 = vmatpush1.msra.mxu0 0.0
        %1166 = vmatprep.subr.mxu0 0.0
        %1167 = vmatpush1.msra.mxu0 0.0
        %1168 = vmatprep.subr.mxu0 0.0
        %1169 = vmatpush1.msra.mxu0 0.0
        %1170 = vmatprep.subr.mxu0 0.0
        %1171 = vmatpush1.msra.mxu0 0.0
        %1172 = vmatprep.subr.mxu0 0.0
        %1173 = vmatpush1.msra.mxu0 0.0
        %1174 = vmatprep.mubr.f32.mxu0 0.0
        %1175 = vmatmul.mubr.f32.gmra.mrb[0].mxu0 %v1108
        %v1176 = vpop.f32.mrb[0].mxu0
        %v1177 = vadd.f32 %v1033, %v1176
        %v1178 = vpop.f32.mrb[0].mxu0
        %1179 = vdwg.mxu0
        %v1180 = vrcp.pop %v997
        %v1181 = vrcp.pop %v998
        %v1182 = vmul.f32 %v1104, %v1180
        %v1183 = vmul.f32 %v1177, %v1181
        %v1184 = vld [vmem:[%s5] sm:$0xff]
        %v1185 = vld [vmem:[%s5 + $0x8] sm:$0xff]
        %v1186 = vld [vmem:[%s5 + $0x10] sm:$0xff]
        %v1187 = vld [vmem:[%s5 + $0x18] sm:$0xff]
        %v1189 = vsel %vm776, %v1182, 0
        %1191 = vmatprep.subr.mxu0 0.0
        %1192 = vmatpush1.msra.mxu0 %v1184
        %1193 = vmatprep.subr.mxu0 0.0
        %1194 = vmatpush1.msra.mxu0 %v1185
        %1195 = vmatprep.subr.mxu0 0.0
        %1196 = vmatpush1.msra.mxu0 0.0
        %1197 = vmatprep.subr.mxu0 0.0
        %1198 = vmatpush1.msra.mxu0 0.0
        %1199 = vmatprep.subr.mxu0 0.0
        %1200 = vmatpush1.msra.mxu0 0.0
        %1201 = vmatprep.subr.mxu0 0.0
        %1202 = vmatpush1.msra.mxu0 0.0
        %1203 = vmatprep.subr.mxu0 0.0
        %1204 = vmatpush1.msra.mxu0 0.0
        %1205 = vmatprep.subr.mxu0 0.0
        %1206 = vmatpush1.msra.mxu0 0.0
        %1207 = vmatprep.subr.mxu0 0.0
        %1208 = vmatpush1.msra.mxu0 0.0
        %1209 = vmatprep.subr.mxu0 0.0
        %1210 = vmatpush1.msra.mxu0 0.0
        %1211 = vmatprep.subr.mxu0 0.0
        %1212 = vmatpush1.msra.mxu0 0.0
        %1213 = vmatprep.subr.mxu0 0.0
        %1214 = vmatpush1.msra.mxu0 0.0
        %1215 = vmatprep.subr.mxu0 0.0
        %1216 = vmatpush1.msra.mxu0 0.0
        %1217 = vmatprep.subr.mxu0 0.0
        %1218 = vmatpush1.msra.mxu0 0.0
        %1219 = vmatprep.subr.mxu0 0.0
        %1220 = vmatpush1.msra.mxu0 0.0
        %1221 = vmatprep.subr.mxu0 0.0
        %1222 = vmatpush1.msra.mxu0 0.0
        %1223 = vmatprep.subr.mxu0 0.0
        %1224 = vmatpush1.msra.mxu0 0.0
        %1225 = vmatprep.subr.mxu0 0.0
        %1226 = vmatpush1.msra.mxu0 0.0
        %1227 = vmatprep.subr.mxu0 0.0
        %1228 = vmatpush1.msra.mxu0 0.0
        %1229 = vmatprep.subr.mxu0 0.0
        %1230 = vmatpush1.msra.mxu0 0.0
        %1231 = vmatprep.subr.mxu0 0.0
        %1232 = vmatpush1.msra.mxu0 0.0
        %1233 = vmatprep.subr.mxu0 0.0
        %1234 = vmatpush1.msra.mxu0 0.0
        %1235 = vmatprep.subr.mxu0 0.0
        %1236 = vmatpush1.msra.mxu0 0.0
        %1237 = vmatprep.subr.mxu0 0.0
        %1238 = vmatpush1.msra.mxu0 0.0
        %1239 = vmatprep.subr.mxu0 0.0
        %1240 = vmatpush1.msra.mxu0 0.0
        %1241 = vmatprep.subr.mxu0 0.0
        %1242 = vmatpush1.msra.mxu0 0.0
        %1243 = vmatprep.subr.mxu0 0.0
        %1244 = vmatpush1.msra.mxu0 0.0
        %1245 = vmatprep.subr.mxu0 0.0
        %1246 = vmatpush1.msra.mxu0 0.0
        %1247 = vmatprep.subr.mxu0 0.0
        %1248 = vmatpush1.msra.mxu0 0.0
        %1249 = vmatprep.subr.mxu0 0.0
        %1250 = vmatpush1.msra.mxu0 0.0
        %1251 = vmatprep.subr.mxu0 0.0
        %1252 = vmatpush1.msra.mxu0 0.0
        %1253 = vmatprep.subr.mxu0 0.0
        %1254 = vmatpush1.msra.mxu0 0.0
        %1255 = vmatprep.mubr.f32.mxu0 0.0
        %1256 = vmatmul.mubr.f32.gmra.mrb[0].mxu0 %v1189
        %v1257 = vpop.f32.mrb[0].mxu0
        %v1258 = vadd.f32 0.0, %v1257
        %v1259 = vpop.f32.mrb[0].mxu0
        %1260 = vdwg.mxu0
        %v1262 = vsel %vm776, %v1183, 0
        %1264 = vmatprep.subr.mxu0 0.0
        %1265 = vmatpush1.msra.mxu0 %v1186
        %1266 = vmatprep.subr.mxu0 0.0
        %1267 = vmatpush1.msra.mxu0 %v1187
        %1268 = vmatprep.subr.mxu0 0.0
        %1269 = vmatpush1.msra.mxu0 0.0
        %1270 = vmatprep.subr.mxu0 0.0
        %1271 = vmatpush1.msra.mxu0 0.0
        %1272 = vmatprep.subr.mxu0 0.0
        %1273 = vmatpush1.msra.mxu0 0.0
        %1274 = vmatprep.subr.mxu0 0.0
        %1275 = vmatpush1.msra.mxu0 0.0
        %1276 = vmatprep.subr.mxu0 0.0
        %1277 = vmatpush1.msra.mxu0 0.0
        %1278 = vmatprep.subr.mxu0 0.0
        %1279 = vmatpush1.msra.mxu0 0.0
        %1280 = vmatprep.subr.mxu0 0.0
        %1281 = vmatpush1.msra.mxu0 0.0
        %1282 = vmatprep.subr.mxu0 0.0
        %1283 = vmatpush1.msra.mxu0 0.0
        %1284 = vmatprep.subr.mxu0 0.0
        %1285 = vmatpush1.msra.mxu0 0.0
        %1286 = vmatprep.subr.mxu0 0.0
        %1287 = vmatpush1.msra.mxu0 0.0
        %1288 = vmatprep.subr.mxu0 0.0
        %1289 = vmatpush1.msra.mxu0 0.0
        %1290 = vmatprep.subr.mxu0 0.0
        %1291 = vmatpush1.msra.mxu0 0.0
        %1292 = vmatprep.subr.mxu0 0.0
        %1293 = vmatpush1.msra.mxu0 0.0
        %1294 = vmatprep.subr.mxu0 0.0
        %1295 = vmatpush1.msra.mxu0 0.0
        %1296 = vmatprep.subr.mxu0 0.0
        %1297 = vmatpush1.msra.mxu0 0.0
        %1298 = vmatprep.subr.mxu0 0.0
        %1299 = vmatpush1.msra.mxu0 0.0
        %1300 = vmatprep.subr.mxu0 0.0
        %1301 = vmatpush1.msra.mxu0 0.0
        %1302 = vmatprep.subr.mxu0 0.0
        %1303 = vmatpush1.msra.mxu0 0.0
        %1304 = vmatprep.subr.mxu0 0.0
        %1305 = vmatpush1.msra.mxu0 0.0
        %1306 = vmatprep.subr.mxu0 0.0
        %1307 = vmatpush1.msra.mxu0 0.0
        %1308 = vmatprep.subr.mxu0 0.0
        %1309 = vmatpush1.msra.mxu0 0.0
        %1310 = vmatprep.subr.mxu0 0.0
        %1311 = vmatpush1.msra.mxu0 0.0
        %1312 = vmatprep.subr.mxu0 0.0
        %1313 = vmatpush1.msra.mxu0 0.0
        %1314 = vmatprep.subr.mxu0 0.0
        %1315 = vmatpush1.msra.mxu0 0.0
        %1316 = vmatprep.subr.mxu0 0.0
        %1317 = vmatpush1.msra.mxu0 0.0
        %1318 = vmatprep.subr.mxu0 0.0
        %1319 = vmatpush1.msra.mxu0 0.0
        %1320 = vmatprep.subr.mxu0 0.0
        %1321 = vmatpush1.msra.mxu0 0.0
        %1322 = vmatprep.subr.mxu0 0.0
        %1323 = vmatpush1.msra.mxu0 0.0
        %1324 = vmatprep.subr.mxu0 0.0
        %1325 = vmatpush1.msra.mxu0 0.0
        %1326 = vmatprep.subr.mxu0 0.0
        %1327 = vmatpush1.msra.mxu0 0.0
        %1328 = vmatprep.mubr.f32.mxu0 0.0
        %1329 = vmatmul.mubr.f32.gmra.mrb[0].mxu0 %v1262
        %v1330 = vpop.f32.mrb[0].mxu0
        %v1331 = vadd.f32 0.0, %v1330
        %v1332 = vpop.f32.mrb[0].mxu0
        %1333 = vdwg.mxu0
        %v1334 = vsel %vm303, %v1258, 0.0
        %v1335 = vsel %vm303, %v1331, 0.0
        %v1336 = vadd.f32 %v1334, %v1335
        %1337 = vst.msk [vmem:[%s296] sm:$0xff] %vm303, %v1336
        %s1338 = sand.u32 %s203, 1
        %s1339 = scalar_lea.sflag [#allocation3], %s1338
        %s1340 = sand.u32 %s203, 1
        %s1341 = smul.addr %s1340, 8
        %s1342 = scalar_lea.vmem [#allocation2], %s1341
        // Predicated region
        $region53: #{tpu_custom_call.1} parent=51 // pred_check
          %p1343 = pneg %p213
        $region54: #{tpu_custom_call.1} parent=51 // pred_check_branch
          %1345 = sbr.rel (%p1343) target = $region56
        $region55: #{tpu_custom_call.1} parent=51 // pred_region
          %s1347 = ssub.s32 128, 128
          %1348 = vsyncadd %s1339, %s1347
          %s1349 = smul.addr %s22, 128
          %s1350 = scalar_lea.hbm %s8, %s1349
          %s1352 = sshll.u32 %s1342, 4
          %s1353 = int_to_ptr.vmem [resolvable:$true] %s1352
          %1355 = dma.vmem_to_hbm [thread:$0]  %s1353, 128, %s1350, %s1339
        $region56: #{tpu_custom_call.1} parent=51 // pred_fallthru
          _
      $region52: #{tpu_custom_call.1} parent=5 // pred_fallthru
        _
      %p1356 = scmp.le.s32.totalorder 2, %s17
      // Predicated region
      $region57: #{tpu_custom_call.1} parent=5 // pred_check
        %p1357 = pneg %p1356
      $region58: #{tpu_custom_call.1} parent=5 // pred_check_branch
        %1359 = sbr.rel (%p1357) target = $region60
      $region59: #{tpu_custom_call.1} parent=5 // pred_region
        %s1360 = ssub.s32 %s17, 2
        // Predicated region
        $region61: #{tpu_custom_call.1} parent=59 // pred_check
          %p1361 = pneg %p219
        $region62: #{tpu_custom_call.1} parent=59 // pred_check_branch
          %1363 = sbr.rel (%p1361) target = $region64
        $region63: #{tpu_custom_call.1} parent=59 // pred_region
          %s1364 = sand.u32 %s204, 1
          %s1365 = scalar_lea.sflag [#allocation3], %s1364
          %s1366 = sand.u32 %s204, 1
          %s1367 = smul.addr %s1366, 8
          %s1368 = scalar_lea.vmem [#allocation2], %s1367
          %1369 = dma.done %s1365, 128
        $region64: #{tpu_custom_call.1} parent=59 // pred_fallthru
          _
      $region60: #{tpu_custom_call.1} parent=5 // pred_fallthru
        _
    $region6: #{tpu_custom_call.1} parent=1 // loop_footer
      %s21 = sadd.s32 1, %s17
    $region7: #{tpu_custom_call.1} parent=1 // loop_footer_branch
      %16 = sbr.rel target = $region3
    $region8: #{tpu_custom_call.1} parent=1 // loop_exit
      _
    %1370 = vsyncpa [#allocation3], 1
    %s1371 = scalar_lea.sflag [#allocation3], 1
    %1372 = vsyncpa %s1371, 1

</llo_original>
